<compile_context>
chip_gen: v6e
topology: v6e:2x2x1
jax: 0.10.0
libtpu: 0.0.40
codegen_flags: <defaults>
</compile_context>

<pallas_src>
import functools

import jax
import jax.numpy as jnp
from jax.experimental import pallas as pl
from jax.experimental.pallas import tpu as pltpu


def conv_stats_kernel(x_ref, w_ref, y_ref, s_ref, sq_ref, *, KH, KW, Ho, Wo):
    """One grid step = one group of `bb` batch elements.

    x_ref  : (bb, Hp, Wp, Cin) padded NHWC tile
    w_ref  : (KH*KW*Cin, Cout) single 2-D weight slab (tap-major, channel-minor rows)
    y_ref  : (bb*Ho*Wo, Cout)  conv output (f32)
    s_ref / sq_ref : (1, Cout) per-group channel sum / sum-of-squares
    """
    bb, _, _, Cin = x_ref.shape
    M = bb * Ho * Wo
    # Fold the KH*KW filter taps into the matmul contraction dim: concatenate the
    # shifted windows along channels (tap-major, channel-minor, matching w_ref's row
    # order) -> one (M, KH*KW*Cin) operand and a single MXU dot with K = KH*KW*Cin,
    # instead of KH*KW accumulated K=Cin dots.
    taps = []
    for i in range(KH):
        for j in range(KW):
            taps.append(x_ref[:, pl.ds(i, Ho), pl.ds(j, Wo), :].reshape(M, Cin))
    patches = jnp.concatenate(taps, axis=-1)                    # (M, KH*KW*Cin)
    acc = jnp.dot(patches, w_ref[...], preferred_element_type=jnp.float32)
    # TODO(synk): emit y lane-dense ((bb*Ho, Wo*Cout)) directly from this kernel once the
    # (M, Cout)->(bb*Ho, Wo*Cout) in-kernel relayout is expressible; for now the lane-dense
    # view for the elementwise pass is a free HBM-level reshape in the wrapper.
    y_ref[...] = acc.astype(y_ref.dtype)
    # Per-group channel statistics; the tiny cross-group reduction happens in the
    # wrapper, which keeps this grid axis safely "parallel".
    s_ref[...] = jnp.sum(acc, axis=0, keepdims=True)
    sq_ref[...] = jnp.sum(acc * acc, axis=0, keepdims=True)


def bn_relu_kernel(y_ref, scale_ref, shift_ref, o_ref, *, relu: bool):
    """Lane-dense elementwise y*scale + shift (folded BN) with optional ReLU."""
    out = y_ref[...] * scale_ref[...] + shift_ref[...]
    if relu:
        out = jnp.maximum(out, 0.0)
    o_ref[...] = out


def init_conv_block_params(key, in_channels, out_channels, kernel_size=3):
    kw, kb = jax.random.split(key)
    fan_in = in_channels * kernel_size * kernel_size
    w = jax.random.normal(kw, (out_channels, in_channels, kernel_size, kernel_size),
                          jnp.float32) * (1.0 / jnp.sqrt(fan_in))
    b = jax.random.normal(kb, (out_channels,), jnp.float32) * 0.1
    gamma = 1.0 + 0.1 * jnp.arange(out_channels, dtype=jnp.float32)
    beta = 0.05 * jnp.arange(out_channels, dtype=jnp.float32)
    return {"w": w, "b": b, "gamma": gamma, "beta": beta}


def _pick_row_tile(total_rows, target):
    """Largest tile <= target that divides total_rows and is a multiple of 8
    (falls back to the full extent, which is always a legal block)."""
    t = min(target, total_rows)
    while t >= 8:
        if total_rows % t == 0:
            return t
        t -= 8
    return total_rows


def _pick_batch_block(B, per_elem_bytes, budget_bytes=24 * 1024 * 1024, min_steps=2):
    """Largest divisor bb of B whose double-buffered per-step footprint fits the VMEM
    budget, while keeping at least `min_steps` grid steps (both v7x TensorCores busy)."""
    want_steps = min(min_steps, B)
    best = 1
    for bb in range(1, B + 1):
        if B % bb == 0 and (B // bb) >= want_steps and 2 * bb * per_elem_bytes <= budget_bytes:
            best = bb
    return best


def conv_block_forward(x_nchw, params, *, with_nonlinearity=True, padding=1, eps=1e-5,
                       compute_dtype=jnp.bfloat16, row_tile=512):
    """Conv(3x3, stride 1) -> BatchNorm2d(training-mode stats) -> optional ReLU.

    Accepts / returns NCHW to match the PyTorch module. compute_dtype controls the
    matmul-input dtype only (accumulation, stats and the BN/ReLU pass stay f32).
    """
    w = params["w"]
    gamma, beta = params["gamma"], params["beta"]
    # NOTE: params["b"] (conv bias) is intentionally unused: a constant per-channel
    # shift is exactly cancelled by the training-mode BatchNorm that follows.
    Cout, Cin, KH, KW = w.shape
    B, C, H, W = x_nchw.shape
    assert C == Cin

    # --- glue: NCHW -> NHWC + zero pad (one small pass over the input; no HBM im2col) ---
    # TODO(synk): accepting NHWC at the API boundary would remove these transposes.
    x = jnp.transpose(x_nchw, (0, 2, 3, 1)).astype(compute_dtype)
    xp = jnp.pad(x, ((0, 0), (padding, padding), (padding, padding), (0, 0)))
    Hp, Wp = H + 2 * padding, W + 2 * padding
    Ho, Wo = Hp - KH + 1, Wp - KW + 1

    # weights (Cout,Cin,KH,KW) -> one 2-D (KH*KW*Cin, Cout) slab; row = (i*KW + j)*Cin + c
    w2 = jnp.transpose(w, (2, 3, 1, 0)).reshape(KH * KW * Cin, Cout).astype(compute_dtype)

    # --- batch elements per grid step (VMEM-aware; >= 2 parallel steps when B >= 2) ---
    cdt_bytes = jnp.dtype(compute_dtype).itemsize
    per_elem = Hp * Wp * Cin * cdt_bytes + Ho * Wo * Cout * 4
    bb = _pick_batch_block(B, per_elem)
    G = B // bb
    # TODO(synk): for large H/W add a row-halo grid axis so the per-step tile stays within
    # v7x's smaller (64 MiB) VMEM instead of growing with the whole padded image.
    # TODO(synk): on bandwidth-limited parts (v5e) a variant that emits only the stats in
    # pass 1 and recomputes the conv fused with BN+ReLU in pass 2 cuts HBM traffic ~40%.

    # --- kernel 1: folded-tap halo conv + fused per-group channel stats, grid over B/bb ---
    y, s_part, sq_part = pl.pallas_call(
        functools.partial(conv_stats_kernel, KH=KH, KW=KW, Ho=Ho, Wo=Wo),
        out_shape=(jax.ShapeDtypeStruct((B * Ho * Wo, Cout), jnp.float32),
                   jax.ShapeDtypeStruct((G, 1, Cout), jnp.float32),
                   jax.ShapeDtypeStruct((G, 1, Cout), jnp.float32)),
        grid_spec=pltpu.PrefetchScalarGridSpec(
            num_scalar_prefetch=0, grid=(G,),
            in_specs=[pl.BlockSpec((bb, Hp, Wp, Cin), lambda g: (g, 0, 0, 0)),
                      pl.BlockSpec((KH * KW * Cin, Cout), lambda g: (0, 0))],
            out_specs=(pl.BlockSpec((bb * Ho * Wo, Cout), lambda g: (g, 0)),
                       pl.BlockSpec((None, 1, Cout), lambda g: (g, 0, 0)),
                       pl.BlockSpec((None, 1, Cout), lambda g: (g, 0, 0)))),
        compiler_params=pltpu.CompilerParams(
            dimension_semantics=("parallel",),
            vmem_limit_bytes=32 * 1024 * 1024),
    )(xp, w2)

    # --- glue: fold BN training-mode stats into per-channel scale/shift (tiny math) ---
    cnt = B * Ho * Wo
    mean = jnp.sum(s_part, axis=(0, 1)) / cnt
    var = jnp.sum(sq_part, axis=(0, 1)) / cnt - mean * mean     # biased batch variance
    var = jnp.maximum(var, 0.0)      # guard E[y^2]-E[y]^2 cancellation going negative
    # TODO(synk): use a shifted/Welford reduction for very large B*H*W counts.
    scale = gamma * jax.lax.rsqrt(var + eps)
    shift = beta - mean * scale

    # --- kernel 2: lane-dense BN affine (+ ReLU), in place over y ---
    WC = Wo * Cout
    BH = B * Ho
    y2 = y.reshape(BH, WC)                          # free bitcast (same row-major order)
    scale_row = jnp.tile(scale.reshape(1, Cout), (1, Wo))       # (1, Wo*Cout)
    shift_row = jnp.tile(shift.reshape(1, Cout), (1, Wo))

    TM = _pick_row_tile(BH, row_tile)
    # TODO(synk): on v5e/v6e (128 MiB VMEM) row_tile can be raised to ~1024; keep <=512 on v7x.
    out2 = pl.pallas_call(
        functools.partial(bn_relu_kernel, relu=with_nonlinearity),
        out_shape=jax.ShapeDtypeStruct((BH, WC), jnp.float32),
        grid_spec=pltpu.PrefetchScalarGridSpec(
            num_scalar_prefetch=0, grid=(BH // TM,),
            in_specs=[pl.BlockSpec((TM, WC), lambda i: (i, 0)),
                      pl.BlockSpec((1, WC), lambda i: (0, 0)),
                      pl.BlockSpec((1, WC), lambda i: (0, 0))],
            out_specs=pl.BlockSpec((TM, WC), lambda i: (i, 0))),
        compiler_params=pltpu.CompilerParams(
            dimension_semantics=("parallel",),
            vmem_limit_bytes=32 * 1024 * 1024),
        input_output_aliases={0: 0},                 # write over y, no extra buffer
    )(y2, scale_row, shift_row)

    # back to NCHW to match the PyTorch interface
    return out2.reshape(B, Ho, Wo, Cout).transpose(0, 3, 1, 2)


def _reference(x_nchw, params, *, with_nonlinearity=True, eps=1e-5):
    """Pure-JAX f32 reference of Conv(+bias)->BN(train)->ReLU for correctness checking."""
    w, b = params["w"], params["b"]
    gamma, beta = params["gamma"], params["beta"]
    y = jax.lax.conv_general_dilated(
        x_nchw.astype(jnp.float32), w.astype(jnp.float32),
        window_strides=(1, 1), padding=((1, 1), (1, 1)),
        dimension_numbers=("NCHW", "OIHW", "NCHW"))
    y = y + b.reshape(1, -1, 1, 1)
    mean = jnp.mean(y, axis=(0, 2, 3), keepdims=True)
    var = jnp.mean((y - mean) ** 2, axis=(0, 2, 3), keepdims=True)
    y = (y - mean) * jax.lax.rsqrt(var + eps)
    y = y * gamma.reshape(1, -1, 1, 1) + beta.reshape(1, -1, 1, 1)
    if with_nonlinearity:
        y = jnp.maximum(y, 0.0)
    return y


if __name__ == "__main__":
    key = jax.random.PRNGKey(0)
    k_x, k_p = jax.random.split(key)

    B, Cin, H, W = 2, 4, 16, 16
    Cout = 8
    x = jax.random.normal(k_x, (B, Cin, H, W), jnp.float32)
    params = init_conv_block_params(k_p, Cin, Cout, kernel_size=3)

    ref = _reference(x, params, with_nonlinearity=True)

    # Strict correctness check with f32 matmul inputs.
    fwd_f32 = jax.jit(functools.partial(conv_block_forward, with_nonlinearity=True,
                                        compute_dtype=jnp.float32))
    out_f32 = jax.block_until_ready(fwd_f32(x, params))
    assert out_f32.shape == (B, Cout, H, W)
    assert jnp.max(jnp.abs(out_f32 - ref)) < 1e-3, "f32 mismatch vs JAX reference"

    # Default (performance) path: bf16 matmul inputs, f32 accumulation/stats. The looser
    # tolerance reflects bf16 input rounding vs the f32 reference, not a kernel bug.
    fwd = jax.jit(functools.partial(conv_block_forward, with_nonlinearity=True))
    out = jax.block_until_ready(fwd(x, params))
    assert out.shape == (B, Cout, H, W)
    assert jnp.max(jnp.abs(out - ref)) < 2e-1, "bf16 mismatch vs JAX reference"

    print("KERNEL_OK")
</pallas_src>

<mosaic_0001>
module attributes {stable_mosaic.version = 11 : i64} {
  func.func @conv_stats_kernel(%arg0: i32, %arg1: memref<1x18x18x4xf32, #tpu.memory_space<vmem>>, %arg2: memref<36x8xf32, #tpu.memory_space<vmem>>, %arg3: memref<256x8xf32, #tpu.memory_space<vmem>>, %arg4: memref<1x1x8xf32, #tpu.memory_space<vmem>>, %arg5: memref<1x1x8xf32, #tpu.memory_space<vmem>>) attributes {dimension_semantics = [#tpu.dimension_semantics<parallel>], iteration_bounds = array<i64: 2>, scalar_prefetch = 0 : i64, scratch_operands = 0 : i64, tpu.core_type = #tpu.core_type<tc>, window_params = [{transform_indices = @transform_0, window_bounds = array<i64: 1, 18, 18, 4>}, {pipeline_mode = #tpu.pipeline_mode<synchronous>, transform_indices = @transform_1, window_bounds = array<i64: 36, 8>}, {transform_indices = @transform_2, window_bounds = array<i64: 256, 8>}, {transform_indices = @transform_3, window_bounds = array<i64: 1, 1, 8>}, {transform_indices = @transform_4, window_bounds = array<i64: 1, 1, 8>}]} {
    %c0 = arith.constant 0 : index
    %c0_0 = arith.constant 0 : index
    %c0_1 = arith.constant 0 : index
    %c0_2 = arith.constant 0 : index
    %0 = vector.load %arg1[%c0, %c0_0, %c0_1, %c0_2] : memref<1x18x18x4xf32, #tpu.memory_space<vmem>>, vector<1x16x16x4xf32>
    %1 = vector.shape_cast %0 : vector<1x16x16x4xf32> to vector<256x4xf32>
    %c0_3 = arith.constant 0 : index
    %c0_4 = arith.constant 0 : index
    %c1 = arith.constant 1 : index
    %c0_5 = arith.constant 0 : index
    %2 = vector.load %arg1[%c0_3, %c0_4, %c1, %c0_5] : memref<1x18x18x4xf32, #tpu.memory_space<vmem>>, vector<1x16x16x4xf32>
    %3 = vector.shape_cast %2 : vector<1x16x16x4xf32> to vector<256x4xf32>
    %c0_6 = arith.constant 0 : index
    %c0_7 = arith.constant 0 : index
    %c2 = arith.constant 2 : index
    %c0_8 = arith.constant 0 : index
    %4 = vector.load %arg1[%c0_6, %c0_7, %c2, %c0_8] : memref<1x18x18x4xf32, #tpu.memory_space<vmem>>, vector<1x16x16x4xf32>
    %5 = vector.shape_cast %4 : vector<1x16x16x4xf32> to vector<256x4xf32>
    %c0_9 = arith.constant 0 : index
    %c1_10 = arith.constant 1 : index
    %c0_11 = arith.constant 0 : index
    %c0_12 = arith.constant 0 : index
    %6 = vector.load %arg1[%c0_9, %c1_10, %c0_11, %c0_12] : memref<1x18x18x4xf32, #tpu.memory_space<vmem>>, vector<1x16x16x4xf32>
    %7 = vector.shape_cast %6 : vector<1x16x16x4xf32> to vector<256x4xf32>
    %c0_13 = arith.constant 0 : index
    %c1_14 = arith.constant 1 : index
    %c1_15 = arith.constant 1 : index
    %c0_16 = arith.constant 0 : index
    %8 = vector.load %arg1[%c0_13, %c1_14, %c1_15, %c0_16] : memref<1x18x18x4xf32, #tpu.memory_space<vmem>>, vector<1x16x16x4xf32>
    %9 = vector.shape_cast %8 : vector<1x16x16x4xf32> to vector<256x4xf32>
    %c0_17 = arith.constant 0 : index
    %c1_18 = arith.constant 1 : index
    %c2_19 = arith.constant 2 : index
    %c0_20 = arith.constant 0 : index
    %10 = vector.load %arg1[%c0_17, %c1_18, %c2_19, %c0_20] : memref<1x18x18x4xf32, #tpu.memory_space<vmem>>, vector<1x16x16x4xf32>
    %11 = vector.shape_cast %10 : vector<1x16x16x4xf32> to vector<256x4xf32>
    %c0_21 = arith.constant 0 : index
    %c2_22 = arith.constant 2 : index
    %c0_23 = arith.constant 0 : index
    %c0_24 = arith.constant 0 : index
    %12 = vector.load %arg1[%c0_21, %c2_22, %c0_23, %c0_24] : memref<1x18x18x4xf32, #tpu.memory_space<vmem>>, vector<1x16x16x4xf32>
    %13 = vector.shape_cast %12 : vector<1x16x16x4xf32> to vector<256x4xf32>
    %c0_25 = arith.constant 0 : index
    %c2_26 = arith.constant 2 : index
    %c1_27 = arith.constant 1 : index
    %c0_28 = arith.constant 0 : index
    %14 = vector.load %arg1[%c0_25, %c2_26, %c1_27, %c0_28] : memref<1x18x18x4xf32, #tpu.memory_space<vmem>>, vector<1x16x16x4xf32>
    %15 = vector.shape_cast %14 : vector<1x16x16x4xf32> to vector<256x4xf32>
    %c0_29 = arith.constant 0 : index
    %c2_30 = arith.constant 2 : index
    %c2_31 = arith.constant 2 : index
    %c0_32 = arith.constant 0 : index
    %16 = vector.load %arg1[%c0_29, %c2_30, %c2_31, %c0_32] : memref<1x18x18x4xf32, #tpu.memory_space<vmem>>, vector<1x16x16x4xf32>
    %17 = vector.shape_cast %16 : vector<1x16x16x4xf32> to vector<256x4xf32>
    %18 = tpu.concatenate %1, %3, %5, %7, %9, %11, %13, %15, %17 in 1 : vector<256x4xf32>, vector<256x4xf32>, vector<256x4xf32>, vector<256x4xf32>, vector<256x4xf32>, vector<256x4xf32>, vector<256x4xf32>, vector<256x4xf32>, vector<256x4xf32> -> vector<256x36xf32>
    %c0_33 = arith.constant 0 : index
    %c0_34 = arith.constant 0 : index
    %19 = vector.load %arg2[%c0_33, %c0_34] : memref<36x8xf32, #tpu.memory_space<vmem>>, vector<36x8xf32>
    %cst = arith.constant dense<0.000000e+00> : vector<256x8xf32>
    %20 = tpu.matmul %18, %19, %cst {dimension_numbers = #tpu.dot_dimension_numbers<[1], [0], [0], [1], [0, 0, 1, 1], [], []>} : vector<256x36xf32>, vector<36x8xf32>, vector<256x8xf32> -> vector<256x8xf32>
    %c0_35 = arith.constant 0 : index
    %c0_36 = arith.constant 0 : index
    %21 = vector.load %arg3[%c0_35, %c0_36] : memref<256x8xf32, #tpu.memory_space<vmem>>, vector<256x8xf32>
    tpu.vector_store %arg3[%c0_35, %c0_36], %20 {strides = array<i32>} : memref<256x8xf32, #tpu.memory_space<vmem>>, vector<256x8xf32>,
    %cst_37 = arith.constant dense<0.000000e+00> : vector<8xf32>
    %22 = vector.multi_reduction <add>, %20, %cst_37 [0] : vector<256x8xf32> to vector<8xf32>
    %23 = vector.shape_cast %22 : vector<8xf32> to vector<1x8xf32>
    %c0_38 = arith.constant 0 : index
    %c0_39 = arith.constant 0 : index
    %c0_40 = arith.constant 0 : index
    %24 = vector.load %arg4[%c0_38, %c0_39, %c0_40] : memref<1x1x8xf32, #tpu.memory_space<vmem>>, vector<1x1x8xf32>
    %25 = vector.shape_cast %24 : vector<1x1x8xf32> to vector<1x8xf32>
    %26 = vector.shape_cast %23 : vector<1x8xf32> to vector<1x1x8xf32>
    tpu.vector_store %arg4[%c0_38, %c0_39, %c0_40], %26 {strides = array<i32>} : memref<1x1x8xf32, #tpu.memory_space<vmem>>, vector<1x1x8xf32>,
    %27 = arith.mulf %20, %20 : vector<256x8xf32>
    %cst_41 = arith.constant dense<0.000000e+00> : vector<8xf32>
    %28 = vector.multi_reduction <add>, %27, %cst_41 [0] : vector<256x8xf32> to vector<8xf32>
    %29 = vector.shape_cast %28 : vector<8xf32> to vector<1x8xf32>
    %c0_42 = arith.constant 0 : index
    %c0_43 = arith.constant 0 : index
    %c0_44 = arith.constant 0 : index
    %30 = vector.load %arg5[%c0_42, %c0_43, %c0_44] : memref<1x1x8xf32, #tpu.memory_space<vmem>>, vector<1x1x8xf32>
    %31 = vector.shape_cast %30 : vector<1x1x8xf32> to vector<1x8xf32>
    %32 = vector.shape_cast %29 : vector<1x8xf32> to vector<1x1x8xf32>
    tpu.vector_store %arg5[%c0_42, %c0_43, %c0_44], %32 {strides = array<i32>} : memref<1x1x8xf32, #tpu.memory_space<vmem>>, vector<1x1x8xf32>,
    return
  }
  func.func @transform_0(%arg0: i32) -> (i32, i32, i32, i32) {
    %c0_i32 = arith.constant 0 : i32
    %c0_i32_0 = arith.constant 0 : i32
    %c0_i32_1 = arith.constant 0 : i32
    %c0_i32_2 = arith.constant 0 : i32
    return %arg0, %c0_i32, %c0_i32_0, %c0_i32_1 : i32, i32, i32, i32
  }
  func.func @transform_1(%arg0: i32) -> (i32, i32) {
    %c0_i32 = arith.constant 0 : i32
    %c0_i32_0 = arith.constant 0 : i32
    %c0_i32_1 = arith.constant 0 : i32
    return %c0_i32, %c0_i32_0 : i32, i32
  }
  func.func @transform_2(%arg0: i32) -> (i32, i32) {
    %c0_i32 = arith.constant 0 : i32
    %c0_i32_0 = arith.constant 0 : i32
    return %arg0, %c0_i32 : i32, i32
  }
  func.func @transform_3(%arg0: i32) -> (i32, i32, i32) {
    %c0_i32 = arith.constant 0 : i32
    %c0_i32_0 = arith.constant 0 : i32
    %c0_i32_1 = arith.constant 0 : i32
    return %arg0, %c0_i32, %c0_i32_0 : i32, i32, i32
  }
  func.func @transform_4(%arg0: i32) -> (i32, i32, i32) {
    %c0_i32 = arith.constant 0 : i32
    %c0_i32_0 = arith.constant 0 : i32
    %c0_i32_1 = arith.constant 0 : i32
    return %arg0, %c0_i32, %c0_i32_0 : i32, i32, i32
  }
}

module attributes {stable_mosaic.version = 11 : i64} {
  func.func @bn_relu_kernel(%arg0: i32, %arg1: memref<32x128xf32, #tpu.memory_space<vmem>>, %arg2: memref<1x128xf32, #tpu.memory_space<vmem>>, %arg3: memref<1x128xf32, #tpu.memory_space<vmem>>, %arg4: memref<32x128xf32, #tpu.memory_space<vmem>>) attributes {dimension_semantics = [#tpu.dimension_semantics<parallel>], iteration_bounds = array<i64: 1>, scalar_prefetch = 0 : i64, scratch_operands = 0 : i64, tpu.core_type = #tpu.core_type<tc>, window_params = [{transform_indices = @transform_0, window_bounds = array<i64: 32, 128>}, {pipeline_mode = #tpu.pipeline_mode<synchronous>, transform_indices = @transform_1, window_bounds = array<i64: 1, 128>}, {pipeline_mode = #tpu.pipeline_mode<synchronous>, transform_indices = @transform_2, window_bounds = array<i64: 1, 128>}, {transform_indices = @transform_3, window_bounds = array<i64: 32, 128>}]} {
    %c0 = arith.constant 0 : index
    %c0_0 = arith.constant 0 : index
    %0 = vector.load %arg1[%c0, %c0_0] : memref<32x128xf32, #tpu.memory_space<vmem>>, vector<32x128xf32>
    %c0_1 = arith.constant 0 : index
    %c0_2 = arith.constant 0 : index
    %1 = vector.load %arg2[%c0_1, %c0_2] : memref<1x128xf32, #tpu.memory_space<vmem>>, vector<1x128xf32>
    %2 = vector.broadcast %1 : vector<1x128xf32> to vector<32x128xf32>
    %3 = arith.mulf %0, %2 : vector<32x128xf32>
    %c0_3 = arith.constant 0 : index
    %c0_4 = arith.constant 0 : index
    %4 = vector.load %arg3[%c0_3, %c0_4] : memref<1x128xf32, #tpu.memory_space<vmem>>, vector<1x128xf32>
    %5 = vector.broadcast %4 : vector<1x128xf32> to vector<32x128xf32>
    %6 = arith.addf %3, %5 : vector<32x128xf32>
    %cst = arith.constant 0.000000e+00 : f32
    %7 = vector.broadcast %cst : f32 to vector<32x128xf32>
    %8 = arith.maximumf %6, %7 : vector<32x128xf32>
    %c0_5 = arith.constant 0 : index
    %c0_6 = arith.constant 0 : index
    %9 = vector.load %arg4[%c0_5, %c0_6] : memref<32x128xf32, #tpu.memory_space<vmem>>, vector<32x128xf32>
    tpu.vector_store %arg4[%c0_5, %c0_6], %8 {strides = array<i32>} : memref<32x128xf32, #tpu.memory_space<vmem>>, vector<32x128xf32>,
    return
  }
  func.func @transform_0(%arg0: i32) -> (i32, i32) {
    %c0_i32 = arith.constant 0 : i32
    %c0_i32_0 = arith.constant 0 : i32
    return %arg0, %c0_i32 : i32, i32
  }
  func.func @transform_1(%arg0: i32) -> (i32, i32) {
    %c0_i32 = arith.constant 0 : i32
    %c0_i32_0 = arith.constant 0 : i32
    %c0_i32_1 = arith.constant 0 : i32
    return %c0_i32, %c0_i32_0 : i32, i32
  }
  func.func @transform_2(%arg0: i32) -> (i32, i32) {
    %c0_i32 = arith.constant 0 : i32
    %c0_i32_0 = arith.constant 0 : i32
    %c0_i32_1 = arith.constant 0 : i32
    return %c0_i32, %c0_i32_0 : i32, i32
  }
  func.func @transform_3(%arg0: i32) -> (i32, i32) {
    %c0_i32 = arith.constant 0 : i32
    %c0_i32_0 = arith.constant 0 : i32
    return %arg0, %c0_i32 : i32, i32
  }
}

</mosaic_0001>

<llo_original>
// kernel: conv_block_forward.3
$region0: #{conv_block_forward.3}
  #allocation0 [shape = 'u32[]', space=smem, size = 0x4, offset = 0x4, fixed_abs, tag = 'smem constant byte address 0x4 - core index']
  #allocation1 [shape = 'u32[144,128]{1,0:T(1,128)}', space=vmem, size = 0x12000, scoped, tag = 'internal scratch']
  %s0 = inlined_call_operand.vmem [shape: f32[32,128], index: 0, kind: input, shape index: {}, may-alias: {0,3}]
  %s1 = inlined_call_operand.vmem [shape: f32[1,128], index: 1, kind: input, shape index: {}]
  %s2 = inlined_call_operand.vmem [shape: f32[1,128], index: 2, kind: input, shape index: {}]
  %s3 = inlined_call_operand.vmem [shape: f32[32,128], index: 3, kind: output, shape index: {}, may-alias: {0,3}]
  %s4 = sld [smem:[#allocation0]]
  $region22: #{conv_block_forward.3} parent=0
    _
  %s6 = ssub.s32 1, %s4
  %s7 = scalar_select 0, %s6, %s4
  // Predicated region
  $region2: #{conv_block_forward.3} parent=0 // pred_check
    _
  $region3: #{conv_block_forward.3} parent=0 // pred_check_branch
    %9 = sbr.rel (0) target = $region5
  $region4: #{conv_block_forward.3} parent=0 // pred_region
    _
  $region5: #{conv_block_forward.3} parent=0 // pred_fallthru
    _
  // Predicated region
  $region6: #{conv_block_forward.3} parent=0 // pred_check
    _
  $region7: #{conv_block_forward.3} parent=0 // pred_check_branch
    %11 = sbr.rel (0) target = $region9
  $region8: #{conv_block_forward.3} parent=0 // pred_region
    _
  $region9: #{conv_block_forward.3} parent=0 // pred_fallthru
    _
  // Predicated region
  $region10: #{conv_block_forward.3} parent=0 // pred_check
    _
  $region11: #{conv_block_forward.3} parent=0 // pred_check_branch
    %13 = sbr.rel (0) target = $region13
  $region12: #{conv_block_forward.3} parent=0 // pred_region
    _
  $region13: #{conv_block_forward.3} parent=0 // pred_fallthru
    _
  %v14 = vld [vmem:[%s0] sm:$0xff]
  %v15 = vld [vmem:[%s0 + $0x8] sm:$0xff]
  %v16 = vld [vmem:[%s0 + $0x10] sm:$0xff]
  %v17 = vld [vmem:[%s0 + $0x18] sm:$0xff]
  %v18 = vld [vmem:[%s1] sm:$0x1]
  %v20 = vlaneseq
  %v21 = vshrl.u32 %v20, 7
  %v22 = vsub.s32 0, %v21
  %v23 = vrot.slane %v18, %v22
  %v25 = vmul.f32 %v14, %v23
  %v26 = vmul.f32 %v15, %v23
  %v27 = vmul.f32 %v16, %v23
  %v28 = vmul.f32 %v17, %v23
  %v29 = vld [vmem:[%s2] sm:$0x1]
  %v31 = vlaneseq
  %v32 = vshrl.u32 %v31, 7
  %v33 = vsub.s32 0, %v32
  %v34 = vrot.slane %v29, %v33
  %v36 = vadd.f32 %v25, %v34
  %v37 = vadd.f32 %v26, %v34
  %v38 = vadd.f32 %v27, %v34
  %v39 = vadd.f32 %v28, %v34
  %v40 = vmax.f32 %v36, 0.0
  %v41 = vmax.f32 %v37, 0.0
  %v42 = vmax.f32 %v38, 0.0
  %v43 = vmax.f32 %v39, 0.0
  %44 = vst [vmem:[%s3] sm:$0xff] %v40
  %45 = vst [vmem:[%s3 + $0x8] sm:$0xff] %v41
  %46 = vst [vmem:[%s3 + $0x10] sm:$0xff] %v42
  %47 = vst [vmem:[%s3 + $0x18] sm:$0xff] %v43
  // Predicated region
  $region14: #{conv_block_forward.3} parent=0 // pred_check
    _
  $region15: #{conv_block_forward.3} parent=0 // pred_check_branch
    %49 = sbr.rel (0) target = $region17
  $region16: #{conv_block_forward.3} parent=0 // pred_region
    _
  $region17: #{conv_block_forward.3} parent=0 // pred_fallthru
    _
  // Predicated region
  $region18: #{conv_block_forward.3} parent=0 // pred_check
    _
  $region19: #{conv_block_forward.3} parent=0 // pred_check_branch
    %51 = sbr.rel (0) target = $region21
  $region20: #{conv_block_forward.3} parent=0 // pred_region
    _
  $region21: #{conv_block_forward.3} parent=0 // pred_fallthru
    _

// kernel: conv_block_forward.2
$region0: #{conv_block_forward.2}
  #allocation0 [shape = 'u32[]', space=smem, size = 0x4, offset = 0x4, fixed_abs, tag = 'smem constant byte address 0x4 - core index']
  #allocation1 [shape = 'u32[144,128]{1,0:T(1,128)}', space=vmem, size = 0x12000, scoped, tag = 'internal scratch']
  %s0 = inlined_call_operand.vmem [shape: f32[2,18,18,4], index: 0, kind: input, shape index: {}]
  %s1 = inlined_call_operand.vmem [shape: f32[36,8], index: 1, kind: input, shape index: {}]
  %s2 = inlined_call_operand.vmem [shape: f32[512,8], index: 2, kind: output, shape index: {0}]
  %s3 = inlined_call_operand.vmem [shape: f32[2,1,8], index: 3, kind: output, shape index: {1}]
  %s4 = inlined_call_operand.vmem [shape: f32[2,1,8], index: 4, kind: output, shape index: {2}]
  %5 = xla_tuple %s2, %s3, %s4
  %s6 = sld [smem:[#allocation0]]
  $region57: #{conv_block_forward.2} parent=0
    _
  %s8 = ssub.s32 1, %s6
  %s9 = scalar_select 0, %s8, %s6
  loop: start=0, step=1, limit=4
  $region2: #{conv_block_forward.2} parent=0 // loop_pre_header
    _
  $region3: #{conv_block_forward.2} parent=0 // loop_header
    %s11 = sphi 0, %s15
    %p12 = scmp.ge.s32.totalorder %s11, 4
    %s21 = sphi 0, %s23
    %s24 = sphi 0, %s21
    %s25 = sphi 0, %s24
    %s41 = sphi 0, %s25
    %s45 = sphi 0, %s45
    %s47 = sphi 0, %s45
    %s48 = sphi 0, %s47
    %s62 = sphi 0, %s48
    %s68 = sphi 0, %s70
    %s71 = sphi 0, %s68
    %s72 = sphi 0, %s71
    %s88 = sphi 0, %s72
    %s94 = sphi 0, %s96
    %s97 = sphi 0, %s94
    %s98 = sphi 0, %s97
    %s114 = sphi 0, %s98
    %s120 = sphi 0, %s122
    %s123 = sphi 0, %s120
    %s124 = sphi 0, %s123
    %s140 = sphi 0, %s124
  $region4: #{conv_block_forward.2} parent=0 // loop_header_branch
    %14 = sbr.rel (%p12) target = $region8
  $region5: #{conv_block_forward.2} parent=0 // loop_body
    %s16 = ssub.s32 %s11, 1
    %s17 = ssub.s32 %s11, 2
    %s18 = sadd.s32 %s11, 1
    %s19 = ssub.s32 %s11, %s18
    %p20 = scmp.eq.s32.totalorder %s19, 0
    %s22 = sadd.s32 %s21, 1
    %s23 = scalar_select %p20, %s21, %s22
    %p26 = pneg %p20
    %p27 = scmp.eq.s32.totalorder %s11, 1
    %p28 = por %p26, %p27
    %p29 = scmp.ne.s32.totalorder %s21, %s24
    %p30 = scmp.eq.s32.totalorder %s11, 0
    %p31 = por %p29, %p30
    %p32 = scmp.ne.s32.totalorder %s21, %s24
    %p33 = scmp.eq.s32.totalorder %s16, 1
    %p34 = por %p32, %p33
    %p35 = scmp.ne.s32.totalorder %s24, %s25
    %p36 = scmp.eq.s32.totalorder %s16, 0
    %p37 = por %p35, %p36
    %p38 = scmp.ne.s32.totalorder %s24, %s25
    %p39 = scmp.eq.s32.totalorder %s17, 1
    %p40 = por %p38, %p39
    %p42 = scmp.ne.s32.totalorder %s25, %s41
    %p43 = scmp.eq.s32.totalorder %s17, 0
    %p44 = por %p42, %p43
    %s46 = sadd.s32 %s45, 1
    %p49 = scmp.eq.s32.totalorder %s11, 1
    %p50 = scmp.ne.s32.totalorder %s45, %s47
    %p51 = scmp.eq.s32.totalorder %s11, 0
    %p52 = por %p50, %p51
    %p53 = scmp.ne.s32.totalorder %s45, %s47
    %p54 = scmp.eq.s32.totalorder %s16, 1
    %p55 = por %p53, %p54
    %p56 = scmp.ne.s32.totalorder %s47, %s48
    %p57 = scmp.eq.s32.totalorder %s16, 0
    %p58 = por %p56, %p57
    %p59 = scmp.ne.s32.totalorder %s47, %s48
    %p60 = scmp.eq.s32.totalorder %s17, 1
    %p61 = por %p59, %p60
    %p63 = scmp.ne.s32.totalorder %s48, %s62
    %p64 = scmp.eq.s32.totalorder %s17, 0
    %p65 = por %p63, %p64
    %s66 = ssub.s32 %s11, %s18
    %p67 = scmp.eq.s32.totalorder %s66, 0
    %s69 = sadd.s32 %s68, 1
    %s70 = scalar_select %p67, %s68, %s69
    %p73 = pneg %p67
    %p74 = scmp.eq.s32.totalorder %s11, 1
    %p75 = por %p73, %p74
    %p76 = scmp.ne.s32.totalorder %s68, %s71
    %p77 = scmp.eq.s32.totalorder %s11, 0
    %p78 = por %p76, %p77
    %p79 = scmp.ne.s32.totalorder %s68, %s71
    %p80 = scmp.eq.s32.totalorder %s16, 1
    %p81 = por %p79, %p80
    %p82 = scmp.ne.s32.totalorder %s71, %s72
    %p83 = scmp.eq.s32.totalorder %s16, 0
    %p84 = por %p82, %p83
    %p85 = scmp.ne.s32.totalorder %s71, %s72
    %p86 = scmp.eq.s32.totalorder %s17, 1
    %p87 = por %p85, %p86
    %p89 = scmp.ne.s32.totalorder %s72, %s88
    %p90 = scmp.eq.s32.totalorder %s17, 0
    %p91 = por %p89, %p90
    %s92 = ssub.s32 %s11, %s18
    %p93 = scmp.eq.s32.totalorder %s92, 0
    %s95 = sadd.s32 %s94, 1
    %s96 = scalar_select %p93, %s94, %s95
    %p99 = pneg %p93
    %p100 = scmp.eq.s32.totalorder %s11, 1
    %p101 = por %p99, %p100
    %p102 = scmp.ne.s32.totalorder %s94, %s97
    %p103 = scmp.eq.s32.totalorder %s11, 0
    %p104 = por %p102, %p103
    %p105 = scmp.ne.s32.totalorder %s94, %s97
    %p106 = scmp.eq.s32.totalorder %s16, 1
    %p107 = por %p105, %p106
    %p108 = scmp.ne.s32.totalorder %s97, %s98
    %p109 = scmp.eq.s32.totalorder %s16, 0
    %p110 = por %p108, %p109
    %p111 = scmp.ne.s32.totalorder %s97, %s98
    %p112 = scmp.eq.s32.totalorder %s17, 1
    %p113 = por %p111, %p112
    %p115 = scmp.ne.s32.totalorder %s98, %s114
    %p116 = scmp.eq.s32.totalorder %s17, 0
    %p117 = por %p115, %p116
    %s118 = ssub.s32 %s11, %s18
    %p119 = scmp.eq.s32.totalorder %s118, 0
    %s121 = sadd.s32 %s120, 1
    %s122 = scalar_select %p119, %s120, %s121
    %p125 = pneg %p119
    %p126 = scmp.eq.s32.totalorder %s11, 1
    %p127 = por %p125, %p126
    %p128 = scmp.ne.s32.totalorder %s120, %s123
    %p129 = scmp.eq.s32.totalorder %s11, 0
    %p130 = por %p128, %p129
    %p131 = scmp.ne.s32.totalorder %s120, %s123
    %p132 = scmp.eq.s32.totalorder %s16, 1
    %p133 = por %p131, %p132
    %p134 = scmp.ne.s32.totalorder %s123, %s124
    %p135 = scmp.eq.s32.totalorder %s16, 0
    %p136 = por %p134, %p135
    %p137 = scmp.ne.s32.totalorder %s123, %s124
    %p138 = scmp.eq.s32.totalorder %s17, 1
    %p139 = por %p137, %p138
    %p141 = scmp.ne.s32.totalorder %s124, %s140
    %p142 = scmp.eq.s32.totalorder %s17, 0
    %p143 = por %p141, %p142
    %p144 = scmp.le.s32.totalorder 1, %s11
    %p145 = scmp.lt.s32.totalorder %s11, 3
    %p146 = pnand %p144, %p145
    %p147 = pneg %p146
    // Predicated region
    $region9: #{conv_block_forward.2} parent=5 // pred_check
      _
    $region10: #{conv_block_forward.2} parent=5 // pred_check_branch
      %149 = sbr.rel (%p146) target = $region12
    $region11: #{conv_block_forward.2} parent=5 // pred_region
      %s150 = ssub.s32 %s11, 1
      // Predicated region
      $region13: #{conv_block_forward.2} parent=11 // pred_check
        %p151 = pneg %p58
      $region14: #{conv_block_forward.2} parent=11 // pred_check_branch
        %153 = sbr.rel (%p151) target = $region16
      $region15: #{conv_block_forward.2} parent=11 // pred_region
        _
      $region16: #{conv_block_forward.2} parent=11 // pred_fallthru
        _
    $region12: #{conv_block_forward.2} parent=5 // pred_fallthru
      _
    %p154 = scmp.lt.s32.totalorder %s11, 2
    // Predicated region
    $region17: #{conv_block_forward.2} parent=5 // pred_check
      %p155 = pneg %p154
    $region18: #{conv_block_forward.2} parent=5 // pred_check_branch
      %157 = sbr.rel (%p155) target = $region20
    $region19: #{conv_block_forward.2} parent=5 // pred_region
      // Predicated region
      $region21: #{conv_block_forward.2} parent=19 // pred_check
        %p158 = pneg %p31
      $region22: #{conv_block_forward.2} parent=19 // pred_check_branch
        %160 = sbr.rel (%p158) target = $region24
      $region23: #{conv_block_forward.2} parent=19 // pred_region
        %p161 = scmp.lt.s32.totalorder %s11, 1
        %s162 = scalar_select %p161, %s11, 1
        %s163 = smul.addr %s162, 54
        %s164 = smul.addr %s163, 8
        %s165 = scalar_lea.vmem %s0, %s164
      $region24: #{conv_block_forward.2} parent=19 // pred_fallthru
        _
    $region20: #{conv_block_forward.2} parent=5 // pred_fallthru
      _
    %p166 = scmp.le.s32.totalorder 1, %s11
    %p167 = scmp.lt.s32.totalorder %s11, 3
    %p168 = pnand %p166, %p167
    %p169 = pneg %p168
    // Predicated region
    $region25: #{conv_block_forward.2} parent=5 // pred_check
      _
    $region26: #{conv_block_forward.2} parent=5 // pred_check_branch
      %171 = sbr.rel (%p168) target = $region28
    $region27: #{conv_block_forward.2} parent=5 // pred_region
      %s172 = ssub.s32 %s11, 1
      %p173 = scmp.lt.s32.totalorder %s16, 1
      %s174 = scalar_select %p173, %s16, 1
      %s175 = smul.addr %s174, 54
      %s176 = smul.addr %s175, 8
      %s177 = scalar_lea.vmem %s0, %s176
      %p178 = pneg %p37
      %p179 = pneg %p34
      %p180 = pneg %p58
      %p181 = pneg %p55
      %p182 = pneg %p84
      %p183 = pneg %p81
      %s184 = smul.u32 32, %s16
      %p185 = scmp.lt.s32.totalorder %s184, 63
      %s186 = scalar_select %p185, %s184, 63
      %s187 = smul.addr %s186, 8
      %s188 = scalar_lea.vmem %s2, %s187
      %p189 = pneg %p110
      %p190 = pneg %p107
      %p191 = scmp.lt.s32.totalorder %s16, 1
      %s192 = scalar_select %p191, %s16, 1
      %s193 = scalar_lea.vmem %s3, %s192
      %p194 = pneg %p136
      %p195 = pneg %p133
      %p196 = scmp.lt.s32.totalorder %s16, 1
      %s197 = scalar_select %p196, %s16, 1
      %s198 = scalar_lea.vmem %s4, %s197
      %p199 = scmp.lt.s32.totalorder %s16, 1
      %s200 = scalar_select %p199, %s16, 1
      %s201 = smul.addr %s200, 54
      %s202 = smul.addr %s201, 8
      %s203 = scalar_lea.vmem %s0, %s202
      %s204 = smul.u32 32, %s16
      %p205 = scmp.lt.s32.totalorder %s204, 63
      %s206 = scalar_select %p205, %s204, 63
      %s207 = smul.addr %s206, 8
      %s208 = scalar_lea.vmem %s2, %s207
      %s209 = smul.u32 32, %s16
      %p210 = scmp.lt.s32.totalorder %s16, 1
      %s211 = scalar_select %p210, %s16, 1
      %s212 = scalar_lea.vmem %s3, %s211
      %p213 = scmp.lt.s32.totalorder %s16, 1
      %s214 = scalar_select %p213, %s16, 1
      %s215 = scalar_lea.vmem %s4, %s214
      %v216 = vld [vmem:[%s203] sm:$0xff]
      %v217 = vld [vmem:[%s203 + $0x8] sm:$0xff]
      %v218 = vld [vmem:[%s203 + $0x18] sm:$0xff]
      %v219 = vld [vmem:[%s203 + $0x20] sm:$0xff]
      %v220 = vld [vmem:[%s203 + $0x30] sm:$0xff]
      %v221 = vld [vmem:[%s203 + $0x38] sm:$0xff]
      %v222 = vld [vmem:[%s203 + $0x48] sm:$0xff]
      %v223 = vld [vmem:[%s203 + $0x50] sm:$0xff]
      %v224 = vld [vmem:[%s203 + $0x60] sm:$0xff]
      %v225 = vld [vmem:[%s203 + $0x68] sm:$0xff]
      %v226 = vld [vmem:[%s203 + $0x78] sm:$0xff]
      %v227 = vld [vmem:[%s203 + $0x80] sm:$0xff]
      %v228 = vld [vmem:[%s203 + $0x90] sm:$0xff]
      %v229 = vld [vmem:[%s203 + $0x98] sm:$0xff]
      %v230 = vld [vmem:[%s203 + $0xa8] sm:$0xff]
      %v231 = vld [vmem:[%s203 + $0xb0] sm:$0xff]
      %v232 = vld [vmem:[%s203 + $0xc0] sm:$0xff]
      %v233 = vld [vmem:[%s203 + $0xc8] sm:$0xff]
      %v234 = vld [vmem:[%s203 + $0xd8] sm:$0xff]
      %v235 = vld [vmem:[%s203 + $0xe0] sm:$0xff]
      %v236 = vld [vmem:[%s203 + $0xf0] sm:$0xff]
      %v237 = vld [vmem:[%s203 + $0xf8] sm:$0xff]
      %v238 = vld [vmem:[%s203 + $0x108] sm:$0xff]
      %v239 = vld [vmem:[%s203 + $0x110] sm:$0xff]
      %v240 = vld [vmem:[%s203 + $0x120] sm:$0xff]
      %v241 = vld [vmem:[%s203 + $0x128] sm:$0xff]
      %v242 = vld [vmem:[%s203 + $0x138] sm:$0xff]
      %v243 = vld [vmem:[%s203 + $0x140] sm:$0xff]
      %v244 = vld [vmem:[%s203 + $0x150] sm:$0xff]
      %v245 = vld [vmem:[%s203 + $0x158] sm:$0xff]
      %v246 = vld [vmem:[%s203 + $0x168] sm:$0xff]
      %v247 = vld [vmem:[%s203 + $0x170] sm:$0xff]
      %v248 = vld [vmem:[%s203 + $0x1] sm:$0xff]
      %v249 = vld [vmem:[%s203 + $0x9] sm:$0xff]
      %v250 = vld [vmem:[%s203 + $0x19] sm:$0xff]
      %v251 = vld [vmem:[%s203 + $0x21] sm:$0xff]
      %v252 = vld [vmem:[%s203 + $0x31] sm:$0xff]
      %v253 = vld [vmem:[%s203 + $0x39] sm:$0xff]
      %v254 = vld [vmem:[%s203 + $0x49] sm:$0xff]
      %v255 = vld [vmem:[%s203 + $0x51] sm:$0xff]
      %v256 = vld [vmem:[%s203 + $0x61] sm:$0xff]
      %v257 = vld [vmem:[%s203 + $0x69] sm:$0xff]
      %v258 = vld [vmem:[%s203 + $0x79] sm:$0xff]
      %v259 = vld [vmem:[%s203 + $0x81] sm:$0xff]
      %v260 = vld [vmem:[%s203 + $0x91] sm:$0xff]
      %v261 = vld [vmem:[%s203 + $0x99] sm:$0xff]
      %v262 = vld [vmem:[%s203 + $0xa9] sm:$0xff]
      %v263 = vld [vmem:[%s203 + $0xb1] sm:$0xff]
      %v264 = vld [vmem:[%s203 + $0xc1] sm:$0xff]
      %v265 = vld [vmem:[%s203 + $0xc9] sm:$0xff]
      %v266 = vld [vmem:[%s203 + $0xd9] sm:$0xff]
      %v267 = vld [vmem:[%s203 + $0xe1] sm:$0xff]
      %v268 = vld [vmem:[%s203 + $0xf1] sm:$0xff]
      %v269 = vld [vmem:[%s203 + $0xf9] sm:$0xff]
      %v270 = vld [vmem:[%s203 + $0x109] sm:$0xff]
      %v271 = vld [vmem:[%s203 + $0x111] sm:$0xff]
      %v272 = vld [vmem:[%s203 + $0x121] sm:$0xff]
      %v273 = vld [vmem:[%s203 + $0x129] sm:$0xff]
      %v274 = vld [vmem:[%s203 + $0x139] sm:$0xff]
      %v275 = vld [vmem:[%s203 + $0x141] sm:$0xff]
      %v276 = vld [vmem:[%s203 + $0x151] sm:$0xff]
      %v277 = vld [vmem:[%s203 + $0x159] sm:$0xff]
      %v278 = vld [vmem:[%s203 + $0x169] sm:$0xff]
      %v279 = vld [vmem:[%s203 + $0x171] sm:$0xff]
      %v280 = vld [vmem:[%s203 + $0x2] sm:$0xff]
      %v281 = vld [vmem:[%s203 + $0xa] sm:$0xff]
      %v282 = vld [vmem:[%s203 + $0x1a] sm:$0xff]
      %v283 = vld [vmem:[%s203 + $0x22] sm:$0xff]
      %v284 = vld [vmem:[%s203 + $0x32] sm:$0xff]
      %v285 = vld [vmem:[%s203 + $0x3a] sm:$0xff]
      %v286 = vld [vmem:[%s203 + $0x4a] sm:$0xff]
      %v287 = vld [vmem:[%s203 + $0x52] sm:$0xff]
      %v288 = vld [vmem:[%s203 + $0x62] sm:$0xff]
      %v289 = vld [vmem:[%s203 + $0x6a] sm:$0xff]
      %v290 = vld [vmem:[%s203 + $0x7a] sm:$0xff]
      %v291 = vld [vmem:[%s203 + $0x82] sm:$0xff]
      %v292 = vld [vmem:[%s203 + $0x92] sm:$0xff]
      %v293 = vld [vmem:[%s203 + $0x9a] sm:$0xff]
      %v294 = vld [vmem:[%s203 + $0xaa] sm:$0xff]
      %v295 = vld [vmem:[%s203 + $0xb2] sm:$0xff]
      %v296 = vld [vmem:[%s203 + $0xc2] sm:$0xff]
      %v297 = vld [vmem:[%s203 + $0xca] sm:$0xff]
      %v298 = vld [vmem:[%s203 + $0xda] sm:$0xff]
      %v299 = vld [vmem:[%s203 + $0xe2] sm:$0xff]
      %v300 = vld [vmem:[%s203 + $0xf2] sm:$0xff]
      %v301 = vld [vmem:[%s203 + $0xfa] sm:$0xff]
      %v302 = vld [vmem:[%s203 + $0x10a] sm:$0xff]
      %v303 = vld [vmem:[%s203 + $0x112] sm:$0xff]
      %v304 = vld [vmem:[%s203 + $0x122] sm:$0xff]
      %v305 = vld [vmem:[%s203 + $0x12a] sm:$0xff]
      %v306 = vld [vmem:[%s203 + $0x13a] sm:$0xff]
      %v307 = vld [vmem:[%s203 + $0x142] sm:$0xff]
      %v308 = vld [vmem:[%s203 + $0x152] sm:$0xff]
      %v309 = vld [vmem:[%s203 + $0x15a] sm:$0xff]
      %v310 = vld [vmem:[%s203 + $0x16a] sm:$0xff]
      %v311 = vld [vmem:[%s203 + $0x172] sm:$0xff]
      %s312 = scalar_lea.vmem %s203, 24
      %v313 = vld [vmem:[%s312] sm:$0xff]
      %v314 = vld [vmem:[%s312 + $0x8] sm:$0xff]
      %v315 = vld [vmem:[%s312 + $0x18] sm:$0xff]
      %v316 = vld [vmem:[%s312 + $0x20] sm:$0xff]
      %v317 = vld [vmem:[%s312 + $0x30] sm:$0xff]
      %v318 = vld [vmem:[%s312 + $0x38] sm:$0xff]
      %v319 = vld [vmem:[%s312 + $0x48] sm:$0xff]
      %v320 = vld [vmem:[%s312 + $0x50] sm:$0xff]
      %v321 = vld [vmem:[%s312 + $0x60] sm:$0xff]
      %v322 = vld [vmem:[%s312 + $0x68] sm:$0xff]
      %v323 = vld [vmem:[%s312 + $0x78] sm:$0xff]
      %v324 = vld [vmem:[%s312 + $0x80] sm:$0xff]
      %v325 = vld [vmem:[%s312 + $0x90] sm:$0xff]
      %v326 = vld [vmem:[%s312 + $0x98] sm:$0xff]
      %v327 = vld [vmem:[%s312 + $0xa8] sm:$0xff]
      %v328 = vld [vmem:[%s312 + $0xb0] sm:$0xff]
      %v329 = vld [vmem:[%s312 + $0xc0] sm:$0xff]
      %v330 = vld [vmem:[%s312 + $0xc8] sm:$0xff]
      %v331 = vld [vmem:[%s312 + $0xd8] sm:$0xff]
      %v332 = vld [vmem:[%s312 + $0xe0] sm:$0xff]
      %v333 = vld [vmem:[%s312 + $0xf0] sm:$0xff]
      %v334 = vld [vmem:[%s312 + $0xf8] sm:$0xff]
      %v335 = vld [vmem:[%s312 + $0x108] sm:$0xff]
      %v336 = vld [vmem:[%s312 + $0x110] sm:$0xff]
      %v337 = vld [vmem:[%s312 + $0x120] sm:$0xff]
      %v338 = vld [vmem:[%s312 + $0x128] sm:$0xff]
      %v339 = vld [vmem:[%s312 + $0x138] sm:$0xff]
      %v340 = vld [vmem:[%s312 + $0x140] sm:$0xff]
      %v341 = vld [vmem:[%s312 + $0x150] sm:$0xff]
      %v342 = vld [vmem:[%s312 + $0x158] sm:$0xff]
      %v343 = vld [vmem:[%s312 + $0x168] sm:$0xff]
      %v344 = vld [vmem:[%s312 + $0x170] sm:$0xff]
      %v345 = vld [vmem:[%s312 + $0x1] sm:$0xff]
      %v346 = vld [vmem:[%s312 + $0x9] sm:$0xff]
      %v347 = vld [vmem:[%s312 + $0x19] sm:$0xff]
      %v348 = vld [vmem:[%s312 + $0x21] sm:$0xff]
      %v349 = vld [vmem:[%s312 + $0x31] sm:$0xff]
      %v350 = vld [vmem:[%s312 + $0x39] sm:$0xff]
      %v351 = vld [vmem:[%s312 + $0x49] sm:$0xff]
      %v352 = vld [vmem:[%s312 + $0x51] sm:$0xff]
      %v353 = vld [vmem:[%s312 + $0x61] sm:$0xff]
      %v354 = vld [vmem:[%s312 + $0x69] sm:$0xff]
      %v355 = vld [vmem:[%s312 + $0x79] sm:$0xff]
      %v356 = vld [vmem:[%s312 + $0x81] sm:$0xff]
      %v357 = vld [vmem:[%s312 + $0x91] sm:$0xff]
      %v358 = vld [vmem:[%s312 + $0x99] sm:$0xff]
      %v359 = vld [vmem:[%s312 + $0xa9] sm:$0xff]
      %v360 = vld [vmem:[%s312 + $0xb1] sm:$0xff]
      %v361 = vld [vmem:[%s312 + $0xc1] sm:$0xff]
      %v362 = vld [vmem:[%s312 + $0xc9] sm:$0xff]
      %v363 = vld [vmem:[%s312 + $0xd9] sm:$0xff]
      %v364 = vld [vmem:[%s312 + $0xe1] sm:$0xff]
      %v365 = vld [vmem:[%s312 + $0xf1] sm:$0xff]
      %v366 = vld [vmem:[%s312 + $0xf9] sm:$0xff]
      %v367 = vld [vmem:[%s312 + $0x109] sm:$0xff]
      %v368 = vld [vmem:[%s312 + $0x111] sm:$0xff]
      %v369 = vld [vmem:[%s312 + $0x121] sm:$0xff]
      %v370 = vld [vmem:[%s312 + $0x129] sm:$0xff]
      %v371 = vld [vmem:[%s312 + $0x139] sm:$0xff]
      %v372 = vld [vmem:[%s312 + $0x141] sm:$0xff]
      %v373 = vld [vmem:[%s312 + $0x151] sm:$0xff]
      %v374 = vld [vmem:[%s312 + $0x159] sm:$0xff]
      %v375 = vld [vmem:[%s312 + $0x169] sm:$0xff]
      %v376 = vld [vmem:[%s312 + $0x171] sm:$0xff]
      %v377 = vld [vmem:[%s312 + $0x2] sm:$0xff]
      %v378 = vld [vmem:[%s312 + $0xa] sm:$0xff]
      %v379 = vld [vmem:[%s312 + $0x1a] sm:$0xff]
      %v380 = vld [vmem:[%s312 + $0x22] sm:$0xff]
      %v381 = vld [vmem:[%s312 + $0x32] sm:$0xff]
      %v382 = vld [vmem:[%s312 + $0x3a] sm:$0xff]
      %v383 = vld [vmem:[%s312 + $0x4a] sm:$0xff]
      %v384 = vld [vmem:[%s312 + $0x52] sm:$0xff]
      %v385 = vld [vmem:[%s312 + $0x62] sm:$0xff]
      %v386 = vld [vmem:[%s312 + $0x6a] sm:$0xff]
      %v387 = vld [vmem:[%s312 + $0x7a] sm:$0xff]
      %v388 = vld [vmem:[%s312 + $0x82] sm:$0xff]
      %v389 = vld [vmem:[%s312 + $0x92] sm:$0xff]
      %v390 = vld [vmem:[%s312 + $0x9a] sm:$0xff]
      %v391 = vld [vmem:[%s312 + $0xaa] sm:$0xff]
      %v392 = vld [vmem:[%s312 + $0xb2] sm:$0xff]
      %v393 = vld [vmem:[%s312 + $0xc2] sm:$0xff]
      %v394 = vld [vmem:[%s312 + $0xca] sm:$0xff]
      %v395 = vld [vmem:[%s312 + $0xda] sm:$0xff]
      %v396 = vld [vmem:[%s312 + $0xe2] sm:$0xff]
      %v397 = vld [vmem:[%s312 + $0xf2] sm:$0xff]
      %v398 = vld [vmem:[%s312 + $0xfa] sm:$0xff]
      %v399 = vld [vmem:[%s312 + $0x10a] sm:$0xff]
      %v400 = vld [vmem:[%s312 + $0x112] sm:$0xff]
      %v401 = vld [vmem:[%s312 + $0x122] sm:$0xff]
      %v402 = vld [vmem:[%s312 + $0x12a] sm:$0xff]
      %v403 = vld [vmem:[%s312 + $0x13a] sm:$0xff]
      %v404 = vld [vmem:[%s312 + $0x142] sm:$0xff]
      %v405 = vld [vmem:[%s312 + $0x152] sm:$0xff]
      %v406 = vld [vmem:[%s312 + $0x15a] sm:$0xff]
      %v407 = vld [vmem:[%s312 + $0x16a] sm:$0xff]
      %v408 = vld [vmem:[%s312 + $0x172] sm:$0xff]
      %s409 = scalar_lea.vmem %s203, 48
      %v410 = vld [vmem:[%s409] sm:$0xff]
      %v411 = vld [vmem:[%s409 + $0x8] sm:$0xff]
      %v412 = vld [vmem:[%s409 + $0x18] sm:$0xff]
      %v413 = vld [vmem:[%s409 + $0x20] sm:$0xff]
      %v414 = vld [vmem:[%s409 + $0x30] sm:$0xff]
      %v415 = vld [vmem:[%s409 + $0x38] sm:$0xff]
      %v416 = vld [vmem:[%s409 + $0x48] sm:$0xff]
      %v417 = vld [vmem:[%s409 + $0x50] sm:$0xff]
      %v418 = vld [vmem:[%s409 + $0x60] sm:$0xff]
      %v419 = vld [vmem:[%s409 + $0x68] sm:$0xff]
      %v420 = vld [vmem:[%s409 + $0x78] sm:$0xff]
      %v421 = vld [vmem:[%s409 + $0x80] sm:$0xff]
      %v422 = vld [vmem:[%s409 + $0x90] sm:$0xff]
      %v423 = vld [vmem:[%s409 + $0x98] sm:$0xff]
      %v424 = vld [vmem:[%s409 + $0xa8] sm:$0xff]
      %v425 = vld [vmem:[%s409 + $0xb0] sm:$0xff]
      %v426 = vld [vmem:[%s409 + $0xc0] sm:$0xff]
      %v427 = vld [vmem:[%s409 + $0xc8] sm:$0xff]
      %v428 = vld [vmem:[%s409 + $0xd8] sm:$0xff]
      %v429 = vld [vmem:[%s409 + $0xe0] sm:$0xff]
      %v430 = vld [vmem:[%s409 + $0xf0] sm:$0xff]
      %v431 = vld [vmem:[%s409 + $0xf8] sm:$0xff]
      %v432 = vld [vmem:[%s409 + $0x108] sm:$0xff]
      %v433 = vld [vmem:[%s409 + $0x110] sm:$0xff]
      %v434 = vld [vmem:[%s409 + $0x120] sm:$0xff]
      %v435 = vld [vmem:[%s409 + $0x128] sm:$0xff]
      %v436 = vld [vmem:[%s409 + $0x138] sm:$0xff]
      %v437 = vld [vmem:[%s409 + $0x140] sm:$0xff]
      %v438 = vld [vmem:[%s409 + $0x150] sm:$0xff]
      %v439 = vld [vmem:[%s409 + $0x158] sm:$0xff]
      %v440 = vld [vmem:[%s409 + $0x168] sm:$0xff]
      %v441 = vld [vmem:[%s409 + $0x170] sm:$0xff]
      %v442 = vld [vmem:[%s409 + $0x1] sm:$0xff]
      %v443 = vld [vmem:[%s409 + $0x9] sm:$0xff]
      %v444 = vld [vmem:[%s409 + $0x19] sm:$0xff]
      %v445 = vld [vmem:[%s409 + $0x21] sm:$0xff]
      %v446 = vld [vmem:[%s409 + $0x31] sm:$0xff]
      %v447 = vld [vmem:[%s409 + $0x39] sm:$0xff]
      %v448 = vld [vmem:[%s409 + $0x49] sm:$0xff]
      %v449 = vld [vmem:[%s409 + $0x51] sm:$0xff]
      %v450 = vld [vmem:[%s409 + $0x61] sm:$0xff]
      %v451 = vld [vmem:[%s409 + $0x69] sm:$0xff]
      %v452 = vld [vmem:[%s409 + $0x79] sm:$0xff]
      %v453 = vld [vmem:[%s409 + $0x81] sm:$0xff]
      %v454 = vld [vmem:[%s409 + $0x91] sm:$0xff]
      %v455 = vld [vmem:[%s409 + $0x99] sm:$0xff]
      %v456 = vld [vmem:[%s409 + $0xa9] sm:$0xff]
      %v457 = vld [vmem:[%s409 + $0xb1] sm:$0xff]
      %v458 = vld [vmem:[%s409 + $0xc1] sm:$0xff]
      %v459 = vld [vmem:[%s409 + $0xc9] sm:$0xff]
      %v460 = vld [vmem:[%s409 + $0xd9] sm:$0xff]
      %v461 = vld [vmem:[%s409 + $0xe1] sm:$0xff]
      %v462 = vld [vmem:[%s409 + $0xf1] sm:$0xff]
      %v463 = vld [vmem:[%s409 + $0xf9] sm:$0xff]
      %v464 = vld [vmem:[%s409 + $0x109] sm:$0xff]
      %v465 = vld [vmem:[%s409 + $0x111] sm:$0xff]
      %v466 = vld [vmem:[%s409 + $0x121] sm:$0xff]
      %v467 = vld [vmem:[%s409 + $0x129] sm:$0xff]
      %v468 = vld [vmem:[%s409 + $0x139] sm:$0xff]
      %v469 = vld [vmem:[%s409 + $0x141] sm:$0xff]
      %v470 = vld [vmem:[%s409 + $0x151] sm:$0xff]
      %v471 = vld [vmem:[%s409 + $0x159] sm:$0xff]
      %v472 = vld [vmem:[%s409 + $0x169] sm:$0xff]
      %v473 = vld [vmem:[%s409 + $0x171] sm:$0xff]
      %v474 = vld [vmem:[%s409 + $0x2] sm:$0xff]
      %v475 = vld [vmem:[%s409 + $0xa] sm:$0xff]
      %v476 = vld [vmem:[%s409 + $0x1a] sm:$0xff]
      %v477 = vld [vmem:[%s409 + $0x22] sm:$0xff]
      %v478 = vld [vmem:[%s409 + $0x32] sm:$0xff]
      %v479 = vld [vmem:[%s409 + $0x3a] sm:$0xff]
      %v480 = vld [vmem:[%s409 + $0x4a] sm:$0xff]
      %v481 = vld [vmem:[%s409 + $0x52] sm:$0xff]
      %v482 = vld [vmem:[%s409 + $0x62] sm:$0xff]
      %v483 = vld [vmem:[%s409 + $0x6a] sm:$0xff]
      %v484 = vld [vmem:[%s409 + $0x7a] sm:$0xff]
      %v485 = vld [vmem:[%s409 + $0x82] sm:$0xff]
      %v486 = vld [vmem:[%s409 + $0x92] sm:$0xff]
      %v487 = vld [vmem:[%s409 + $0x9a] sm:$0xff]
      %v488 = vld [vmem:[%s409 + $0xaa] sm:$0xff]
      %v489 = vld [vmem:[%s409 + $0xb2] sm:$0xff]
      %v490 = vld [vmem:[%s409 + $0xc2] sm:$0xff]
      %v491 = vld [vmem:[%s409 + $0xca] sm:$0xff]
      %v492 = vld [vmem:[%s409 + $0xda] sm:$0xff]
      %v493 = vld [vmem:[%s409 + $0xe2] sm:$0xff]
      %v494 = vld [vmem:[%s409 + $0xf2] sm:$0xff]
      %v495 = vld [vmem:[%s409 + $0xfa] sm:$0xff]
      %v496 = vld [vmem:[%s409 + $0x10a] sm:$0xff]
      %v497 = vld [vmem:[%s409 + $0x112] sm:$0xff]
      %v498 = vld [vmem:[%s409 + $0x122] sm:$0xff]
      %v499 = vld [vmem:[%s409 + $0x12a] sm:$0xff]
      %v500 = vld [vmem:[%s409 + $0x13a] sm:$0xff]
      %v501 = vld [vmem:[%s409 + $0x142] sm:$0xff]
      %v502 = vld [vmem:[%s409 + $0x152] sm:$0xff]
      %v503 = vld [vmem:[%s409 + $0x15a] sm:$0xff]
      %v504 = vld [vmem:[%s409 + $0x16a] sm:$0xff]
      %v505 = vld [vmem:[%s409 + $0x172] sm:$0xff]
      %538 = vrot.lane.b32.xlu0 %v248, 4
      %v539 = vpop.permute.xlu0 %538
      %540 = vrot.lane.b32.xlu0 %v249, 4
      %v541 = vpop.permute.xlu0 %540
      %542 = vrot.lane.b32.xlu0 %v250, 4
      %v543 = vpop.permute.xlu0 %542
      %544 = vrot.lane.b32.xlu0 %v251, 4
      %v545 = vpop.permute.xlu0 %544
      %546 = vrot.lane.b32.xlu0 %v252, 4
      %v547 = vpop.permute.xlu0 %546
      %548 = vrot.lane.b32.xlu0 %v253, 4
      %v549 = vpop.permute.xlu0 %548
      %550 = vrot.lane.b32.xlu0 %v254, 4
      %v551 = vpop.permute.xlu0 %550
      %552 = vrot.lane.b32.xlu0 %v255, 4
      %v553 = vpop.permute.xlu0 %552
      %554 = vrot.lane.b32.xlu0 %v256, 4
      %v555 = vpop.permute.xlu0 %554
      %556 = vrot.lane.b32.xlu0 %v257, 4
      %v557 = vpop.permute.xlu0 %556
      %558 = vrot.lane.b32.xlu0 %v258, 4
      %v559 = vpop.permute.xlu0 %558
      %560 = vrot.lane.b32.xlu0 %v259, 4
      %v561 = vpop.permute.xlu0 %560
      %562 = vrot.lane.b32.xlu0 %v260, 4
      %v563 = vpop.permute.xlu0 %562
      %564 = vrot.lane.b32.xlu0 %v261, 4
      %v565 = vpop.permute.xlu0 %564
      %566 = vrot.lane.b32.xlu0 %v262, 4
      %v567 = vpop.permute.xlu0 %566
      %568 = vrot.lane.b32.xlu0 %v263, 4
      %v569 = vpop.permute.xlu0 %568
      %570 = vrot.lane.b32.xlu0 %v264, 4
      %v571 = vpop.permute.xlu0 %570
      %572 = vrot.lane.b32.xlu0 %v265, 4
      %v573 = vpop.permute.xlu0 %572
      %574 = vrot.lane.b32.xlu0 %v266, 4
      %v575 = vpop.permute.xlu0 %574
      %576 = vrot.lane.b32.xlu0 %v267, 4
      %v577 = vpop.permute.xlu0 %576
      %578 = vrot.lane.b32.xlu0 %v268, 4
      %v579 = vpop.permute.xlu0 %578
      %580 = vrot.lane.b32.xlu0 %v269, 4
      %v581 = vpop.permute.xlu0 %580
      %582 = vrot.lane.b32.xlu0 %v270, 4
      %v583 = vpop.permute.xlu0 %582
      %584 = vrot.lane.b32.xlu0 %v271, 4
      %v585 = vpop.permute.xlu0 %584
      %586 = vrot.lane.b32.xlu0 %v272, 4
      %v587 = vpop.permute.xlu0 %586
      %588 = vrot.lane.b32.xlu0 %v273, 4
      %v589 = vpop.permute.xlu0 %588
      %590 = vrot.lane.b32.xlu0 %v274, 4
      %v591 = vpop.permute.xlu0 %590
      %592 = vrot.lane.b32.xlu0 %v275, 4
      %v593 = vpop.permute.xlu0 %592
      %594 = vrot.lane.b32.xlu0 %v276, 4
      %v595 = vpop.permute.xlu0 %594
      %596 = vrot.lane.b32.xlu0 %v277, 4
      %v597 = vpop.permute.xlu0 %596
      %598 = vrot.lane.b32.xlu0 %v278, 4
      %v599 = vpop.permute.xlu0 %598
      %600 = vrot.lane.b32.xlu0 %v279, 4
      %v601 = vpop.permute.xlu0 %600
      %666 = vrot.lane.b32.xlu0 %v280, 8
      %v667 = vpop.permute.xlu0 %666
      %668 = vrot.lane.b32.xlu0 %v281, 8
      %v669 = vpop.permute.xlu0 %668
      %670 = vrot.lane.b32.xlu0 %v282, 8
      %v671 = vpop.permute.xlu0 %670
      %672 = vrot.lane.b32.xlu0 %v283, 8
      %v673 = vpop.permute.xlu0 %672
      %674 = vrot.lane.b32.xlu0 %v284, 8
      %v675 = vpop.permute.xlu0 %674
      %676 = vrot.lane.b32.xlu0 %v285, 8
      %v677 = vpop.permute.xlu0 %676
      %678 = vrot.lane.b32.xlu0 %v286, 8
      %v679 = vpop.permute.xlu0 %678
      %680 = vrot.lane.b32.xlu0 %v287, 8
      %v681 = vpop.permute.xlu0 %680
      %682 = vrot.lane.b32.xlu0 %v288, 8
      %v683 = vpop.permute.xlu0 %682
      %684 = vrot.lane.b32.xlu0 %v289, 8
      %v685 = vpop.permute.xlu0 %684
      %686 = vrot.lane.b32.xlu0 %v290, 8
      %v687 = vpop.permute.xlu0 %686
      %688 = vrot.lane.b32.xlu0 %v291, 8
      %v689 = vpop.permute.xlu0 %688
      %690 = vrot.lane.b32.xlu0 %v292, 8
      %v691 = vpop.permute.xlu0 %690
      %692 = vrot.lane.b32.xlu0 %v293, 8
      %v693 = vpop.permute.xlu0 %692
      %694 = vrot.lane.b32.xlu0 %v294, 8
      %v695 = vpop.permute.xlu0 %694
      %696 = vrot.lane.b32.xlu0 %v295, 8
      %v697 = vpop.permute.xlu0 %696
      %698 = vrot.lane.b32.xlu0 %v296, 8
      %v699 = vpop.permute.xlu0 %698
      %700 = vrot.lane.b32.xlu0 %v297, 8
      %v701 = vpop.permute.xlu0 %700
      %702 = vrot.lane.b32.xlu0 %v298, 8
      %v703 = vpop.permute.xlu0 %702
      %704 = vrot.lane.b32.xlu0 %v299, 8
      %v705 = vpop.permute.xlu0 %704
      %706 = vrot.lane.b32.xlu0 %v300, 8
      %v707 = vpop.permute.xlu0 %706
      %708 = vrot.lane.b32.xlu0 %v301, 8
      %v709 = vpop.permute.xlu0 %708
      %710 = vrot.lane.b32.xlu0 %v302, 8
      %v711 = vpop.permute.xlu0 %710
      %712 = vrot.lane.b32.xlu0 %v303, 8
      %v713 = vpop.permute.xlu0 %712
      %714 = vrot.lane.b32.xlu0 %v304, 8
      %v715 = vpop.permute.xlu0 %714
      %716 = vrot.lane.b32.xlu0 %v305, 8
      %v717 = vpop.permute.xlu0 %716
      %718 = vrot.lane.b32.xlu0 %v306, 8
      %v719 = vpop.permute.xlu0 %718
      %720 = vrot.lane.b32.xlu0 %v307, 8
      %v721 = vpop.permute.xlu0 %720
      %722 = vrot.lane.b32.xlu0 %v308, 8
      %v723 = vpop.permute.xlu0 %722
      %724 = vrot.lane.b32.xlu0 %v309, 8
      %v725 = vpop.permute.xlu0 %724
      %726 = vrot.lane.b32.xlu0 %v310, 8
      %v727 = vpop.permute.xlu0 %726
      %728 = vrot.lane.b32.xlu0 %v311, 8
      %v729 = vpop.permute.xlu0 %728
      %794 = vrot.lane.b32.xlu0 %v313, 12
      %v795 = vpop.permute.xlu0 %794
      %796 = vrot.lane.b32.xlu0 %v314, 12
      %v797 = vpop.permute.xlu0 %796
      %798 = vrot.lane.b32.xlu0 %v315, 12
      %v799 = vpop.permute.xlu0 %798
      %800 = vrot.lane.b32.xlu0 %v316, 12
      %v801 = vpop.permute.xlu0 %800
      %802 = vrot.lane.b32.xlu0 %v317, 12
      %v803 = vpop.permute.xlu0 %802
      %804 = vrot.lane.b32.xlu0 %v318, 12
      %v805 = vpop.permute.xlu0 %804
      %806 = vrot.lane.b32.xlu0 %v319, 12
      %v807 = vpop.permute.xlu0 %806
      %808 = vrot.lane.b32.xlu0 %v320, 12
      %v809 = vpop.permute.xlu0 %808
      %810 = vrot.lane.b32.xlu0 %v321, 12
      %v811 = vpop.permute.xlu0 %810
      %812 = vrot.lane.b32.xlu0 %v322, 12
      %v813 = vpop.permute.xlu0 %812
      %814 = vrot.lane.b32.xlu0 %v323, 12
      %v815 = vpop.permute.xlu0 %814
      %816 = vrot.lane.b32.xlu0 %v324, 12
      %v817 = vpop.permute.xlu0 %816
      %818 = vrot.lane.b32.xlu0 %v325, 12
      %v819 = vpop.permute.xlu0 %818
      %820 = vrot.lane.b32.xlu0 %v326, 12
      %v821 = vpop.permute.xlu0 %820
      %822 = vrot.lane.b32.xlu0 %v327, 12
      %v823 = vpop.permute.xlu0 %822
      %824 = vrot.lane.b32.xlu0 %v328, 12
      %v825 = vpop.permute.xlu0 %824
      %826 = vrot.lane.b32.xlu0 %v329, 12
      %v827 = vpop.permute.xlu0 %826
      %828 = vrot.lane.b32.xlu0 %v330, 12
      %v829 = vpop.permute.xlu0 %828
      %830 = vrot.lane.b32.xlu0 %v331, 12
      %v831 = vpop.permute.xlu0 %830
      %832 = vrot.lane.b32.xlu0 %v332, 12
      %v833 = vpop.permute.xlu0 %832
      %834 = vrot.lane.b32.xlu0 %v333, 12
      %v835 = vpop.permute.xlu0 %834
      %836 = vrot.lane.b32.xlu0 %v334, 12
      %v837 = vpop.permute.xlu0 %836
      %838 = vrot.lane.b32.xlu0 %v335, 12
      %v839 = vpop.permute.xlu0 %838
      %840 = vrot.lane.b32.xlu0 %v336, 12
      %v841 = vpop.permute.xlu0 %840
      %842 = vrot.lane.b32.xlu0 %v337, 12
      %v843 = vpop.permute.xlu0 %842
      %844 = vrot.lane.b32.xlu0 %v338, 12
      %v845 = vpop.permute.xlu0 %844
      %846 = vrot.lane.b32.xlu0 %v339, 12
      %v847 = vpop.permute.xlu0 %846
      %848 = vrot.lane.b32.xlu0 %v340, 12
      %v849 = vpop.permute.xlu0 %848
      %850 = vrot.lane.b32.xlu0 %v341, 12
      %v851 = vpop.permute.xlu0 %850
      %852 = vrot.lane.b32.xlu0 %v342, 12
      %v853 = vpop.permute.xlu0 %852
      %854 = vrot.lane.b32.xlu0 %v343, 12
      %v855 = vpop.permute.xlu0 %854
      %856 = vrot.lane.b32.xlu0 %v344, 12
      %v857 = vpop.permute.xlu0 %856
      %922 = vrot.lane.b32.xlu0 %v345, 16
      %v923 = vpop.permute.xlu0 %922
      %924 = vrot.lane.b32.xlu0 %v346, 16
      %v925 = vpop.permute.xlu0 %924
      %926 = vrot.lane.b32.xlu0 %v347, 16
      %v927 = vpop.permute.xlu0 %926
      %928 = vrot.lane.b32.xlu0 %v348, 16
      %v929 = vpop.permute.xlu0 %928
      %930 = vrot.lane.b32.xlu0 %v349, 16
      %v931 = vpop.permute.xlu0 %930
      %932 = vrot.lane.b32.xlu0 %v350, 16
      %v933 = vpop.permute.xlu0 %932
      %934 = vrot.lane.b32.xlu0 %v351, 16
      %v935 = vpop.permute.xlu0 %934
      %936 = vrot.lane.b32.xlu0 %v352, 16
      %v937 = vpop.permute.xlu0 %936
      %938 = vrot.lane.b32.xlu0 %v353, 16
      %v939 = vpop.permute.xlu0 %938
      %940 = vrot.lane.b32.xlu0 %v354, 16
      %v941 = vpop.permute.xlu0 %940
      %942 = vrot.lane.b32.xlu0 %v355, 16
      %v943 = vpop.permute.xlu0 %942
      %944 = vrot.lane.b32.xlu0 %v356, 16
      %v945 = vpop.permute.xlu0 %944
      %946 = vrot.lane.b32.xlu0 %v357, 16
      %v947 = vpop.permute.xlu0 %946
      %948 = vrot.lane.b32.xlu0 %v358, 16
      %v949 = vpop.permute.xlu0 %948
      %950 = vrot.lane.b32.xlu0 %v359, 16
      %v951 = vpop.permute.xlu0 %950
      %952 = vrot.lane.b32.xlu0 %v360, 16
      %v953 = vpop.permute.xlu0 %952
      %954 = vrot.lane.b32.xlu0 %v361, 16
      %v955 = vpop.permute.xlu0 %954
      %956 = vrot.lane.b32.xlu0 %v362, 16
      %v957 = vpop.permute.xlu0 %956
      %958 = vrot.lane.b32.xlu0 %v363, 16
      %v959 = vpop.permute.xlu0 %958
      %960 = vrot.lane.b32.xlu0 %v364, 16
      %v961 = vpop.permute.xlu0 %960
      %962 = vrot.lane.b32.xlu0 %v365, 16
      %v963 = vpop.permute.xlu0 %962
      %964 = vrot.lane.b32.xlu0 %v366, 16
      %v965 = vpop.permute.xlu0 %964
      %966 = vrot.lane.b32.xlu0 %v367, 16
      %v967 = vpop.permute.xlu0 %966
      %968 = vrot.lane.b32.xlu0 %v368, 16
      %v969 = vpop.permute.xlu0 %968
      %970 = vrot.lane.b32.xlu0 %v369, 16
      %v971 = vpop.permute.xlu0 %970
      %972 = vrot.lane.b32.xlu0 %v370, 16
      %v973 = vpop.permute.xlu0 %972
      %974 = vrot.lane.b32.xlu0 %v371, 16
      %v975 = vpop.permute.xlu0 %974
      %976 = vrot.lane.b32.xlu0 %v372, 16
      %v977 = vpop.permute.xlu0 %976
      %978 = vrot.lane.b32.xlu0 %v373, 16
      %v979 = vpop.permute.xlu0 %978
      %980 = vrot.lane.b32.xlu0 %v374, 16
      %v981 = vpop.permute.xlu0 %980
      %982 = vrot.lane.b32.xlu0 %v375, 16
      %v983 = vpop.permute.xlu0 %982
      %984 = vrot.lane.b32.xlu0 %v376, 16
      %v985 = vpop.permute.xlu0 %984
      %1050 = vrot.lane.b32.xlu0 %v377, 20
      %v1051 = vpop.permute.xlu0 %1050
      %1052 = vrot.lane.b32.xlu0 %v378, 20
      %v1053 = vpop.permute.xlu0 %1052
      %1054 = vrot.lane.b32.xlu0 %v379, 20
      %v1055 = vpop.permute.xlu0 %1054
      %1056 = vrot.lane.b32.xlu0 %v380, 20
      %v1057 = vpop.permute.xlu0 %1056
      %1058 = vrot.lane.b32.xlu0 %v381, 20
      %v1059 = vpop.permute.xlu0 %1058
      %1060 = vrot.lane.b32.xlu0 %v382, 20
      %v1061 = vpop.permute.xlu0 %1060
      %1062 = vrot.lane.b32.xlu0 %v383, 20
      %v1063 = vpop.permute.xlu0 %1062
      %1064 = vrot.lane.b32.xlu0 %v384, 20
      %v1065 = vpop.permute.xlu0 %1064
      %1066 = vrot.lane.b32.xlu0 %v385, 20
      %v1067 = vpop.permute.xlu0 %1066
      %1068 = vrot.lane.b32.xlu0 %v386, 20
      %v1069 = vpop.permute.xlu0 %1068
      %1070 = vrot.lane.b32.xlu0 %v387, 20
      %v1071 = vpop.permute.xlu0 %1070
      %1072 = vrot.lane.b32.xlu0 %v388, 20
      %v1073 = vpop.permute.xlu0 %1072
      %1074 = vrot.lane.b32.xlu0 %v389, 20
      %v1075 = vpop.permute.xlu0 %1074
      %1076 = vrot.lane.b32.xlu0 %v390, 20
      %v1077 = vpop.permute.xlu0 %1076
      %1078 = vrot.lane.b32.xlu0 %v391, 20
      %v1079 = vpop.permute.xlu0 %1078
      %1080 = vrot.lane.b32.xlu0 %v392, 20
      %v1081 = vpop.permute.xlu0 %1080
      %1082 = vrot.lane.b32.xlu0 %v393, 20
      %v1083 = vpop.permute.xlu0 %1082
      %1084 = vrot.lane.b32.xlu0 %v394, 20
      %v1085 = vpop.permute.xlu0 %1084
      %1086 = vrot.lane.b32.xlu0 %v395, 20
      %v1087 = vpop.permute.xlu0 %1086
      %1088 = vrot.lane.b32.xlu0 %v396, 20
      %v1089 = vpop.permute.xlu0 %1088
      %1090 = vrot.lane.b32.xlu0 %v397, 20
      %v1091 = vpop.permute.xlu0 %1090
      %1092 = vrot.lane.b32.xlu0 %v398, 20
      %v1093 = vpop.permute.xlu0 %1092
      %1094 = vrot.lane.b32.xlu0 %v399, 20
      %v1095 = vpop.permute.xlu0 %1094
      %1096 = vrot.lane.b32.xlu0 %v400, 20
      %v1097 = vpop.permute.xlu0 %1096
      %1098 = vrot.lane.b32.xlu0 %v401, 20
      %v1099 = vpop.permute.xlu0 %1098
      %1100 = vrot.lane.b32.xlu0 %v402, 20
      %v1101 = vpop.permute.xlu0 %1100
      %1102 = vrot.lane.b32.xlu0 %v403, 20
      %v1103 = vpop.permute.xlu0 %1102
      %1104 = vrot.lane.b32.xlu0 %v404, 20
      %v1105 = vpop.permute.xlu0 %1104
      %1106 = vrot.lane.b32.xlu0 %v405, 20
      %v1107 = vpop.permute.xlu0 %1106
      %1108 = vrot.lane.b32.xlu0 %v406, 20
      %v1109 = vpop.permute.xlu0 %1108
      %1110 = vrot.lane.b32.xlu0 %v407, 20
      %v1111 = vpop.permute.xlu0 %1110
      %1112 = vrot.lane.b32.xlu0 %v408, 20
      %v1113 = vpop.permute.xlu0 %1112
      %1178 = vrot.lane.b32.xlu0 %v410, 24
      %v1179 = vpop.permute.xlu0 %1178
      %1180 = vrot.lane.b32.xlu0 %v411, 24
      %v1181 = vpop.permute.xlu0 %1180
      %1182 = vrot.lane.b32.xlu0 %v412, 24
      %v1183 = vpop.permute.xlu0 %1182
      %1184 = vrot.lane.b32.xlu0 %v413, 24
      %v1185 = vpop.permute.xlu0 %1184
      %1186 = vrot.lane.b32.xlu0 %v414, 24
      %v1187 = vpop.permute.xlu0 %1186
      %1188 = vrot.lane.b32.xlu0 %v415, 24
      %v1189 = vpop.permute.xlu0 %1188
      %1190 = vrot.lane.b32.xlu0 %v416, 24
      %v1191 = vpop.permute.xlu0 %1190
      %1192 = vrot.lane.b32.xlu0 %v417, 24
      %v1193 = vpop.permute.xlu0 %1192
      %1194 = vrot.lane.b32.xlu0 %v418, 24
      %v1195 = vpop.permute.xlu0 %1194
      %1196 = vrot.lane.b32.xlu0 %v419, 24
      %v1197 = vpop.permute.xlu0 %1196
      %1198 = vrot.lane.b32.xlu0 %v420, 24
      %v1199 = vpop.permute.xlu0 %1198
      %1200 = vrot.lane.b32.xlu0 %v421, 24
      %v1201 = vpop.permute.xlu0 %1200
      %1202 = vrot.lane.b32.xlu0 %v422, 24
      %v1203 = vpop.permute.xlu0 %1202
      %1204 = vrot.lane.b32.xlu0 %v423, 24
      %v1205 = vpop.permute.xlu0 %1204
      %1206 = vrot.lane.b32.xlu0 %v424, 24
      %v1207 = vpop.permute.xlu0 %1206
      %1208 = vrot.lane.b32.xlu0 %v425, 24
      %v1209 = vpop.permute.xlu0 %1208
      %1210 = vrot.lane.b32.xlu0 %v426, 24
      %v1211 = vpop.permute.xlu0 %1210
      %1212 = vrot.lane.b32.xlu0 %v427, 24
      %v1213 = vpop.permute.xlu0 %1212
      %1214 = vrot.lane.b32.xlu0 %v428, 24
      %v1215 = vpop.permute.xlu0 %1214
      %1216 = vrot.lane.b32.xlu0 %v429, 24
      %v1217 = vpop.permute.xlu0 %1216
      %1218 = vrot.lane.b32.xlu0 %v430, 24
      %v1219 = vpop.permute.xlu0 %1218
      %1220 = vrot.lane.b32.xlu0 %v431, 24
      %v1221 = vpop.permute.xlu0 %1220
      %1222 = vrot.lane.b32.xlu0 %v432, 24
      %v1223 = vpop.permute.xlu0 %1222
      %1224 = vrot.lane.b32.xlu0 %v433, 24
      %v1225 = vpop.permute.xlu0 %1224
      %1226 = vrot.lane.b32.xlu0 %v434, 24
      %v1227 = vpop.permute.xlu0 %1226
      %1228 = vrot.lane.b32.xlu0 %v435, 24
      %v1229 = vpop.permute.xlu0 %1228
      %1230 = vrot.lane.b32.xlu0 %v436, 24
      %v1231 = vpop.permute.xlu0 %1230
      %1232 = vrot.lane.b32.xlu0 %v437, 24
      %v1233 = vpop.permute.xlu0 %1232
      %1234 = vrot.lane.b32.xlu0 %v438, 24
      %v1235 = vpop.permute.xlu0 %1234
      %1236 = vrot.lane.b32.xlu0 %v439, 24
      %v1237 = vpop.permute.xlu0 %1236
      %1238 = vrot.lane.b32.xlu0 %v440, 24
      %v1239 = vpop.permute.xlu0 %1238
      %1240 = vrot.lane.b32.xlu0 %v441, 24
      %v1241 = vpop.permute.xlu0 %1240
      %1306 = vrot.lane.b32.xlu0 %v442, 28
      %v1307 = vpop.permute.xlu0 %1306
      %1308 = vrot.lane.b32.xlu0 %v443, 28
      %v1309 = vpop.permute.xlu0 %1308
      %1310 = vrot.lane.b32.xlu0 %v444, 28
      %v1311 = vpop.permute.xlu0 %1310
      %1312 = vrot.lane.b32.xlu0 %v445, 28
      %v1313 = vpop.permute.xlu0 %1312
      %1314 = vrot.lane.b32.xlu0 %v446, 28
      %v1315 = vpop.permute.xlu0 %1314
      %1316 = vrot.lane.b32.xlu0 %v447, 28
      %v1317 = vpop.permute.xlu0 %1316
      %1318 = vrot.lane.b32.xlu0 %v448, 28
      %v1319 = vpop.permute.xlu0 %1318
      %1320 = vrot.lane.b32.xlu0 %v449, 28
      %v1321 = vpop.permute.xlu0 %1320
      %1322 = vrot.lane.b32.xlu0 %v450, 28
      %v1323 = vpop.permute.xlu0 %1322
      %1324 = vrot.lane.b32.xlu0 %v451, 28
      %v1325 = vpop.permute.xlu0 %1324
      %1326 = vrot.lane.b32.xlu0 %v452, 28
      %v1327 = vpop.permute.xlu0 %1326
      %1328 = vrot.lane.b32.xlu0 %v453, 28
      %v1329 = vpop.permute.xlu0 %1328
      %1330 = vrot.lane.b32.xlu0 %v454, 28
      %v1331 = vpop.permute.xlu0 %1330
      %1332 = vrot.lane.b32.xlu0 %v455, 28
      %v1333 = vpop.permute.xlu0 %1332
      %1334 = vrot.lane.b32.xlu0 %v456, 28
      %v1335 = vpop.permute.xlu0 %1334
      %1336 = vrot.lane.b32.xlu0 %v457, 28
      %v1337 = vpop.permute.xlu0 %1336
      %1338 = vrot.lane.b32.xlu0 %v458, 28
      %v1339 = vpop.permute.xlu0 %1338
      %1340 = vrot.lane.b32.xlu0 %v459, 28
      %v1341 = vpop.permute.xlu0 %1340
      %1342 = vrot.lane.b32.xlu0 %v460, 28
      %v1343 = vpop.permute.xlu0 %1342
      %1344 = vrot.lane.b32.xlu0 %v461, 28
      %v1345 = vpop.permute.xlu0 %1344
      %1346 = vrot.lane.b32.xlu0 %v462, 28
      %v1347 = vpop.permute.xlu0 %1346
      %1348 = vrot.lane.b32.xlu0 %v463, 28
      %v1349 = vpop.permute.xlu0 %1348
      %1350 = vrot.lane.b32.xlu0 %v464, 28
      %v1351 = vpop.permute.xlu0 %1350
      %1352 = vrot.lane.b32.xlu0 %v465, 28
      %v1353 = vpop.permute.xlu0 %1352
      %1354 = vrot.lane.b32.xlu0 %v466, 28
      %v1355 = vpop.permute.xlu0 %1354
      %1356 = vrot.lane.b32.xlu0 %v467, 28
      %v1357 = vpop.permute.xlu0 %1356
      %1358 = vrot.lane.b32.xlu0 %v468, 28
      %v1359 = vpop.permute.xlu0 %1358
      %1360 = vrot.lane.b32.xlu0 %v469, 28
      %v1361 = vpop.permute.xlu0 %1360
      %1362 = vrot.lane.b32.xlu0 %v470, 28
      %v1363 = vpop.permute.xlu0 %1362
      %1364 = vrot.lane.b32.xlu0 %v471, 28
      %v1365 = vpop.permute.xlu0 %1364
      %1366 = vrot.lane.b32.xlu0 %v472, 28
      %v1367 = vpop.permute.xlu0 %1366
      %1368 = vrot.lane.b32.xlu0 %v473, 28
      %v1369 = vpop.permute.xlu0 %1368
      %1434 = vrot.lane.b32.xlu0 %v474, 32
      %v1435 = vpop.permute.xlu0 %1434
      %1436 = vrot.lane.b32.xlu0 %v475, 32
      %v1437 = vpop.permute.xlu0 %1436
      %1438 = vrot.lane.b32.xlu0 %v476, 32
      %v1439 = vpop.permute.xlu0 %1438
      %1440 = vrot.lane.b32.xlu0 %v477, 32
      %v1441 = vpop.permute.xlu0 %1440
      %1442 = vrot.lane.b32.xlu0 %v478, 32
      %v1443 = vpop.permute.xlu0 %1442
      %1444 = vrot.lane.b32.xlu0 %v479, 32
      %v1445 = vpop.permute.xlu0 %1444
      %1446 = vrot.lane.b32.xlu0 %v480, 32
      %v1447 = vpop.permute.xlu0 %1446
      %1448 = vrot.lane.b32.xlu0 %v481, 32
      %v1449 = vpop.permute.xlu0 %1448
      %1450 = vrot.lane.b32.xlu0 %v482, 32
      %v1451 = vpop.permute.xlu0 %1450
      %1452 = vrot.lane.b32.xlu0 %v483, 32
      %v1453 = vpop.permute.xlu0 %1452
      %1454 = vrot.lane.b32.xlu0 %v484, 32
      %v1455 = vpop.permute.xlu0 %1454
      %1456 = vrot.lane.b32.xlu0 %v485, 32
      %v1457 = vpop.permute.xlu0 %1456
      %1458 = vrot.lane.b32.xlu0 %v486, 32
      %v1459 = vpop.permute.xlu0 %1458
      %1460 = vrot.lane.b32.xlu0 %v487, 32
      %v1461 = vpop.permute.xlu0 %1460
      %1462 = vrot.lane.b32.xlu0 %v488, 32
      %v1463 = vpop.permute.xlu0 %1462
      %1464 = vrot.lane.b32.xlu0 %v489, 32
      %v1465 = vpop.permute.xlu0 %1464
      %1466 = vrot.lane.b32.xlu0 %v490, 32
      %v1467 = vpop.permute.xlu0 %1466
      %1468 = vrot.lane.b32.xlu0 %v491, 32
      %v1469 = vpop.permute.xlu0 %1468
      %1470 = vrot.lane.b32.xlu0 %v492, 32
      %v1471 = vpop.permute.xlu0 %1470
      %1472 = vrot.lane.b32.xlu0 %v493, 32
      %v1473 = vpop.permute.xlu0 %1472
      %1474 = vrot.lane.b32.xlu0 %v494, 32
      %v1475 = vpop.permute.xlu0 %1474
      %1476 = vrot.lane.b32.xlu0 %v495, 32
      %v1477 = vpop.permute.xlu0 %1476
      %1478 = vrot.lane.b32.xlu0 %v496, 32
      %v1479 = vpop.permute.xlu0 %1478
      %1480 = vrot.lane.b32.xlu0 %v497, 32
      %v1481 = vpop.permute.xlu0 %1480
      %1482 = vrot.lane.b32.xlu0 %v498, 32
      %v1483 = vpop.permute.xlu0 %1482
      %1484 = vrot.lane.b32.xlu0 %v499, 32
      %v1485 = vpop.permute.xlu0 %1484
      %1486 = vrot.lane.b32.xlu0 %v500, 32
      %v1487 = vpop.permute.xlu0 %1486
      %1488 = vrot.lane.b32.xlu0 %v501, 32
      %v1489 = vpop.permute.xlu0 %1488
      %1490 = vrot.lane.b32.xlu0 %v502, 32
      %v1491 = vpop.permute.xlu0 %1490
      %1492 = vrot.lane.b32.xlu0 %v503, 32
      %v1493 = vpop.permute.xlu0 %1492
      %1494 = vrot.lane.b32.xlu0 %v504, 32
      %v1495 = vpop.permute.xlu0 %1494
      %1496 = vrot.lane.b32.xlu0 %v505, 32
      %v1497 = vpop.permute.xlu0 %1496
      %vm1530 = vcmask 31744
      %v1531 = vsel %vm1530, %v216, %v539
      %v1532 = vsel %vm1530, %v217, %v541
      %v1533 = vsel %vm1530, %v218, %v543
      %v1534 = vsel %vm1530, %v219, %v545
      %v1535 = vsel %vm1530, %v220, %v547
      %v1536 = vsel %vm1530, %v221, %v549
      %v1537 = vsel %vm1530, %v222, %v551
      %v1538 = vsel %vm1530, %v223, %v553
      %v1539 = vsel %vm1530, %v224, %v555
      %v1540 = vsel %vm1530, %v225, %v557
      %v1541 = vsel %vm1530, %v226, %v559
      %v1542 = vsel %vm1530, %v227, %v561
      %v1543 = vsel %vm1530, %v228, %v563
      %v1544 = vsel %vm1530, %v229, %v565
      %v1545 = vsel %vm1530, %v230, %v567
      %v1546 = vsel %vm1530, %v231, %v569
      %v1547 = vsel %vm1530, %v232, %v571
      %v1548 = vsel %vm1530, %v233, %v573
      %v1549 = vsel %vm1530, %v234, %v575
      %v1550 = vsel %vm1530, %v235, %v577
      %v1551 = vsel %vm1530, %v236, %v579
      %v1552 = vsel %vm1530, %v237, %v581
      %v1553 = vsel %vm1530, %v238, %v583
      %v1554 = vsel %vm1530, %v239, %v585
      %v1555 = vsel %vm1530, %v240, %v587
      %v1556 = vsel %vm1530, %v241, %v589
      %v1557 = vsel %vm1530, %v242, %v591
      %v1558 = vsel %vm1530, %v243, %v593
      %v1559 = vsel %vm1530, %v244, %v595
      %v1560 = vsel %vm1530, %v245, %v597
      %v1561 = vsel %vm1530, %v246, %v599
      %v1562 = vsel %vm1530, %v247, %v601
      %vm1563 = vcmask 64512
      %v1564 = vsel %vm1563, %v1531, %v667
      %v1565 = vsel %vm1563, %v1532, %v669
      %v1566 = vsel %vm1563, %v1533, %v671
      %v1567 = vsel %vm1563, %v1534, %v673
      %v1568 = vsel %vm1563, %v1535, %v675
      %v1569 = vsel %vm1563, %v1536, %v677
      %v1570 = vsel %vm1563, %v1537, %v679
      %v1571 = vsel %vm1563, %v1538, %v681
      %v1572 = vsel %vm1563, %v1539, %v683
      %v1573 = vsel %vm1563, %v1540, %v685
      %v1574 = vsel %vm1563, %v1541, %v687
      %v1575 = vsel %vm1563, %v1542, %v689
      %v1576 = vsel %vm1563, %v1543, %v691
      %v1577 = vsel %vm1563, %v1544, %v693
      %v1578 = vsel %vm1563, %v1545, %v695
      %v1579 = vsel %vm1563, %v1546, %v697
      %v1580 = vsel %vm1563, %v1547, %v699
      %v1581 = vsel %vm1563, %v1548, %v701
      %v1582 = vsel %vm1563, %v1549, %v703
      %v1583 = vsel %vm1563, %v1550, %v705
      %v1584 = vsel %vm1563, %v1551, %v707
      %v1585 = vsel %vm1563, %v1552, %v709
      %v1586 = vsel %vm1563, %v1553, %v711
      %v1587 = vsel %vm1563, %v1554, %v713
      %v1588 = vsel %vm1563, %v1555, %v715
      %v1589 = vsel %vm1563, %v1556, %v717
      %v1590 = vsel %vm1563, %v1557, %v719
      %v1591 = vsel %vm1563, %v1558, %v721
      %v1592 = vsel %vm1563, %v1559, %v723
      %v1593 = vsel %vm1563, %v1560, %v725
      %v1594 = vsel %vm1563, %v1561, %v727
      %v1595 = vsel %vm1563, %v1562, %v729
      %vm1596 = vcmask 97280
      %v1597 = vsel %vm1596, %v1564, %v795
      %v1598 = vsel %vm1596, %v1565, %v797
      %v1599 = vsel %vm1596, %v1566, %v799
      %v1600 = vsel %vm1596, %v1567, %v801
      %v1601 = vsel %vm1596, %v1568, %v803
      %v1602 = vsel %vm1596, %v1569, %v805
      %v1603 = vsel %vm1596, %v1570, %v807
      %v1604 = vsel %vm1596, %v1571, %v809
      %v1605 = vsel %vm1596, %v1572, %v811
      %v1606 = vsel %vm1596, %v1573, %v813
      %v1607 = vsel %vm1596, %v1574, %v815
      %v1608 = vsel %vm1596, %v1575, %v817
      %v1609 = vsel %vm1596, %v1576, %v819
      %v1610 = vsel %vm1596, %v1577, %v821
      %v1611 = vsel %vm1596, %v1578, %v823
      %v1612 = vsel %vm1596, %v1579, %v825
      %v1613 = vsel %vm1596, %v1580, %v827
      %v1614 = vsel %vm1596, %v1581, %v829
      %v1615 = vsel %vm1596, %v1582, %v831
      %v1616 = vsel %vm1596, %v1583, %v833
      %v1617 = vsel %vm1596, %v1584, %v835
      %v1618 = vsel %vm1596, %v1585, %v837
      %v1619 = vsel %vm1596, %v1586, %v839
      %v1620 = vsel %vm1596, %v1587, %v841
      %v1621 = vsel %vm1596, %v1588, %v843
      %v1622 = vsel %vm1596, %v1589, %v845
      %v1623 = vsel %vm1596, %v1590, %v847
      %v1624 = vsel %vm1596, %v1591, %v849
      %v1625 = vsel %vm1596, %v1592, %v851
      %v1626 = vsel %vm1596, %v1593, %v853
      %v1627 = vsel %vm1596, %v1594, %v855
      %v1628 = vsel %vm1596, %v1595, %v857
      %vm1629 = vcmask 130048
      %v1630 = vsel %vm1629, %v1597, %v923
      %v1631 = vsel %vm1629, %v1598, %v925
      %v1632 = vsel %vm1629, %v1599, %v927
      %v1633 = vsel %vm1629, %v1600, %v929
      %v1634 = vsel %vm1629, %v1601, %v931
      %v1635 = vsel %vm1629, %v1602, %v933
      %v1636 = vsel %vm1629, %v1603, %v935
      %v1637 = vsel %vm1629, %v1604, %v937
      %v1638 = vsel %vm1629, %v1605, %v939
      %v1639 = vsel %vm1629, %v1606, %v941
      %v1640 = vsel %vm1629, %v1607, %v943
      %v1641 = vsel %vm1629, %v1608, %v945
      %v1642 = vsel %vm1629, %v1609, %v947
      %v1643 = vsel %vm1629, %v1610, %v949
      %v1644 = vsel %vm1629, %v1611, %v951
      %v1645 = vsel %vm1629, %v1612, %v953
      %v1646 = vsel %vm1629, %v1613, %v955
      %v1647 = vsel %vm1629, %v1614, %v957
      %v1648 = vsel %vm1629, %v1615, %v959
      %v1649 = vsel %vm1629, %v1616, %v961
      %v1650 = vsel %vm1629, %v1617, %v963
      %v1651 = vsel %vm1629, %v1618, %v965
      %v1652 = vsel %vm1629, %v1619, %v967
      %v1653 = vsel %vm1629, %v1620, %v969
      %v1654 = vsel %vm1629, %v1621, %v971
      %v1655 = vsel %vm1629, %v1622, %v973
      %v1656 = vsel %vm1629, %v1623, %v975
      %v1657 = vsel %vm1629, %v1624, %v977
      %v1658 = vsel %vm1629, %v1625, %v979
      %v1659 = vsel %vm1629, %v1626, %v981
      %v1660 = vsel %vm1629, %v1627, %v983
      %v1661 = vsel %vm1629, %v1628, %v985
      %vm1662 = vcmask 162816
      %v1663 = vsel %vm1662, %v1630, %v1051
      %v1664 = vsel %vm1662, %v1631, %v1053
      %v1665 = vsel %vm1662, %v1632, %v1055
      %v1666 = vsel %vm1662, %v1633, %v1057
      %v1667 = vsel %vm1662, %v1634, %v1059
      %v1668 = vsel %vm1662, %v1635, %v1061
      %v1669 = vsel %vm1662, %v1636, %v1063
      %v1670 = vsel %vm1662, %v1637, %v1065
      %v1671 = vsel %vm1662, %v1638, %v1067
      %v1672 = vsel %vm1662, %v1639, %v1069
      %v1673 = vsel %vm1662, %v1640, %v1071
      %v1674 = vsel %vm1662, %v1641, %v1073
      %v1675 = vsel %vm1662, %v1642, %v1075
      %v1676 = vsel %vm1662, %v1643, %v1077
      %v1677 = vsel %vm1662, %v1644, %v1079
      %v1678 = vsel %vm1662, %v1645, %v1081
      %v1679 = vsel %vm1662, %v1646, %v1083
      %v1680 = vsel %vm1662, %v1647, %v1085
      %v1681 = vsel %vm1662, %v1648, %v1087
      %v1682 = vsel %vm1662, %v1649, %v1089
      %v1683 = vsel %vm1662, %v1650, %v1091
      %v1684 = vsel %vm1662, %v1651, %v1093
      %v1685 = vsel %vm1662, %v1652, %v1095
      %v1686 = vsel %vm1662, %v1653, %v1097
      %v1687 = vsel %vm1662, %v1654, %v1099
      %v1688 = vsel %vm1662, %v1655, %v1101
      %v1689 = vsel %vm1662, %v1656, %v1103
      %v1690 = vsel %vm1662, %v1657, %v1105
      %v1691 = vsel %vm1662, %v1658, %v1107
      %v1692 = vsel %vm1662, %v1659, %v1109
      %v1693 = vsel %vm1662, %v1660, %v1111
      %v1694 = vsel %vm1662, %v1661, %v1113
      %vm1695 = vcmask 195584
      %v1696 = vsel %vm1695, %v1663, %v1179
      %v1697 = vsel %vm1695, %v1664, %v1181
      %v1698 = vsel %vm1695, %v1665, %v1183
      %v1699 = vsel %vm1695, %v1666, %v1185
      %v1700 = vsel %vm1695, %v1667, %v1187
      %v1701 = vsel %vm1695, %v1668, %v1189
      %v1702 = vsel %vm1695, %v1669, %v1191
      %v1703 = vsel %vm1695, %v1670, %v1193
      %v1704 = vsel %vm1695, %v1671, %v1195
      %v1705 = vsel %vm1695, %v1672, %v1197
      %v1706 = vsel %vm1695, %v1673, %v1199
      %v1707 = vsel %vm1695, %v1674, %v1201
      %v1708 = vsel %vm1695, %v1675, %v1203
      %v1709 = vsel %vm1695, %v1676, %v1205
      %v1710 = vsel %vm1695, %v1677, %v1207
      %v1711 = vsel %vm1695, %v1678, %v1209
      %v1712 = vsel %vm1695, %v1679, %v1211
      %v1713 = vsel %vm1695, %v1680, %v1213
      %v1714 = vsel %vm1695, %v1681, %v1215
      %v1715 = vsel %vm1695, %v1682, %v1217
      %v1716 = vsel %vm1695, %v1683, %v1219
      %v1717 = vsel %vm1695, %v1684, %v1221
      %v1718 = vsel %vm1695, %v1685, %v1223
      %v1719 = vsel %vm1695, %v1686, %v1225
      %v1720 = vsel %vm1695, %v1687, %v1227
      %v1721 = vsel %vm1695, %v1688, %v1229
      %v1722 = vsel %vm1695, %v1689, %v1231
      %v1723 = vsel %vm1695, %v1690, %v1233
      %v1724 = vsel %vm1695, %v1691, %v1235
      %v1725 = vsel %vm1695, %v1692, %v1237
      %v1726 = vsel %vm1695, %v1693, %v1239
      %v1727 = vsel %vm1695, %v1694, %v1241
      %vm1728 = vcmask 228352
      %v1729 = vsel %vm1728, %v1696, %v1307
      %v1730 = vsel %vm1728, %v1697, %v1309
      %v1731 = vsel %vm1728, %v1698, %v1311
      %v1732 = vsel %vm1728, %v1699, %v1313
      %v1733 = vsel %vm1728, %v1700, %v1315
      %v1734 = vsel %vm1728, %v1701, %v1317
      %v1735 = vsel %vm1728, %v1702, %v1319
      %v1736 = vsel %vm1728, %v1703, %v1321
      %v1737 = vsel %vm1728, %v1704, %v1323
      %v1738 = vsel %vm1728, %v1705, %v1325
      %v1739 = vsel %vm1728, %v1706, %v1327
      %v1740 = vsel %vm1728, %v1707, %v1329
      %v1741 = vsel %vm1728, %v1708, %v1331
      %v1742 = vsel %vm1728, %v1709, %v1333
      %v1743 = vsel %vm1728, %v1710, %v1335
      %v1744 = vsel %vm1728, %v1711, %v1337
      %v1745 = vsel %vm1728, %v1712, %v1339
      %v1746 = vsel %vm1728, %v1713, %v1341
      %v1747 = vsel %vm1728, %v1714, %v1343
      %v1748 = vsel %vm1728, %v1715, %v1345
      %v1749 = vsel %vm1728, %v1716, %v1347
      %v1750 = vsel %vm1728, %v1717, %v1349
      %v1751 = vsel %vm1728, %v1718, %v1351
      %v1752 = vsel %vm1728, %v1719, %v1353
      %v1753 = vsel %vm1728, %v1720, %v1355
      %v1754 = vsel %vm1728, %v1721, %v1357
      %v1755 = vsel %vm1728, %v1722, %v1359
      %v1756 = vsel %vm1728, %v1723, %v1361
      %v1757 = vsel %vm1728, %v1724, %v1363
      %v1758 = vsel %vm1728, %v1725, %v1365
      %v1759 = vsel %vm1728, %v1726, %v1367
      %v1760 = vsel %vm1728, %v1727, %v1369
      %vm1761 = vcmask 261120
      %v1762 = vsel %vm1761, %v1729, %v1435
      %v1763 = vsel %vm1761, %v1730, %v1437
      %v1764 = vsel %vm1761, %v1731, %v1439
      %v1765 = vsel %vm1761, %v1732, %v1441
      %v1766 = vsel %vm1761, %v1733, %v1443
      %v1767 = vsel %vm1761, %v1734, %v1445
      %v1768 = vsel %vm1761, %v1735, %v1447
      %v1769 = vsel %vm1761, %v1736, %v1449
      %v1770 = vsel %vm1761, %v1737, %v1451
      %v1771 = vsel %vm1761, %v1738, %v1453
      %v1772 = vsel %vm1761, %v1739, %v1455
      %v1773 = vsel %vm1761, %v1740, %v1457
      %v1774 = vsel %vm1761, %v1741, %v1459
      %v1775 = vsel %vm1761, %v1742, %v1461
      %v1776 = vsel %vm1761, %v1743, %v1463
      %v1777 = vsel %vm1761, %v1744, %v1465
      %v1778 = vsel %vm1761, %v1745, %v1467
      %v1779 = vsel %vm1761, %v1746, %v1469
      %v1780 = vsel %vm1761, %v1747, %v1471
      %v1781 = vsel %vm1761, %v1748, %v1473
      %v1782 = vsel %vm1761, %v1749, %v1475
      %v1783 = vsel %vm1761, %v1750, %v1477
      %v1784 = vsel %vm1761, %v1751, %v1479
      %v1785 = vsel %vm1761, %v1752, %v1481
      %v1786 = vsel %vm1761, %v1753, %v1483
      %v1787 = vsel %vm1761, %v1754, %v1485
      %v1788 = vsel %vm1761, %v1755, %v1487
      %v1789 = vsel %vm1761, %v1756, %v1489
      %v1790 = vsel %vm1761, %v1757, %v1491
      %v1791 = vsel %vm1761, %v1758, %v1493
      %v1792 = vsel %vm1761, %v1759, %v1495
      %v1793 = vsel %vm1761, %v1760, %v1497
      %v1794 = vld [vmem:[%s1] sm:$0xff]
      %v1795 = vld [vmem:[%s1 + $0x8] sm:$0xff]
      %v1796 = vld [vmem:[%s1 + $0x10] sm:$0xff]
      %v1797 = vld [vmem:[%s1 + $0x18] sm:$0xff]
      %v1798 = vld [vmem:[%s1 + $0x20] sm:$0xf]
      %vm1799 = vcmask 293888
      %v1801 = vsel %vm1799, %v1762, 0
      %v1804 = vsel %vm1799, %v1763, 0
      %v1807 = vsel %vm1799, %v1764, 0
      %v1810 = vsel %vm1799, %v1765, 0
      %v1813 = vsel %vm1799, %v1766, 0
      %v1816 = vsel %vm1799, %v1767, 0
      %v1819 = vsel %vm1799, %v1768, 0
      %v1822 = vsel %vm1799, %v1769, 0
      %v1825 = vsel %vm1799, %v1770, 0
      %v1828 = vsel %vm1799, %v1771, 0
      %v1831 = vsel %vm1799, %v1772, 0
      %v1834 = vsel %vm1799, %v1773, 0
      %v1837 = vsel %vm1799, %v1774, 0
      %v1840 = vsel %vm1799, %v1775, 0
      %v1843 = vsel %vm1799, %v1776, 0
      %v1846 = vsel %vm1799, %v1777, 0
      %v1849 = vsel %vm1799, %v1778, 0
      %v1852 = vsel %vm1799, %v1779, 0
      %v1855 = vsel %vm1799, %v1780, 0
      %v1858 = vsel %vm1799, %v1781, 0
      %v1861 = vsel %vm1799, %v1782, 0
      %v1864 = vsel %vm1799, %v1783, 0
      %v1867 = vsel %vm1799, %v1784, 0
      %v1870 = vsel %vm1799, %v1785, 0
      %v1873 = vsel %vm1799, %v1786, 0
      %v1876 = vsel %vm1799, %v1787, 0
      %v1879 = vsel %vm1799, %v1788, 0
      %v1882 = vsel %vm1799, %v1789, 0
      %v1885 = vsel %vm1799, %v1790, 0
      %v1888 = vsel %vm1799, %v1791, 0
      %v1891 = vsel %vm1799, %v1792, 0
      %v1894 = vsel %vm1799, %v1793, 0
      %vm1896 = vcmask 1043456
      %v1898 = vsel %vm1896, %v1798, 0
      %1900 = vmatprep.subr.mxu0 0.0
      %1901 = vmatpush1.msra.mxu0 0.0
      %1902 = vmatprep.subr.mxu0 0.0
      %1903 = vmatpush1.msra.mxu0 0.0
      %1904 = vmatprep.subr.mxu0 0.0
      %1905 = vmatpush1.msra.mxu0 0.0
      %1906 = vmatprep.subr.mxu0 0.0
      %1907 = vmatpush1.msra.mxu0 0.0
      %1908 = vmatprep.subr.mxu0 0.0
      %1909 = vmatpush1.msra.mxu0 0.0
      %1910 = vmatprep.subr.mxu0 0.0
      %1911 = vmatpush1.msra.mxu0 0.0
      %1912 = vmatprep.subr.mxu0 0.0
      %1913 = vmatpush1.msra.mxu0 0.0
      %1914 = vmatprep.subr.mxu0 0.0
      %1915 = vmatpush1.msra.mxu0 0.0
      %1916 = vmatprep.subr.mxu0 0.0
      %1917 = vmatpush1.msra.mxu0 0.0
      %1918 = vmatprep.subr.mxu0 0.0
      %1919 = vmatpush1.msra.mxu0 0.0
      %1920 = vmatprep.subr.mxu0 0.0
      %1921 = vmatpush1.msra.mxu0 0.0
      %1922 = vmatprep.subr.mxu0 0.0
      %1923 = vmatpush1.msra.mxu0 %v1898
      %1924 = vmatprep.subr.mxu0 0.0
      %1925 = vmatpush1.msra.mxu0 %v1797
      %1926 = vmatprep.subr.mxu0 0.0
      %1927 = vmatpush1.msra.mxu0 %v1796
      %1928 = vmatprep.subr.mxu0 0.0
      %1929 = vmatpush1.msra.mxu0 %v1795
      %1930 = vmatprep.subr.mxu0 0.0
      %1931 = vmatpush1.msra.mxu0 %v1794
      %1932 = vmatprep.subr.mxu0 0.0
      %1933 = vmatpush2.msra.mxu0 0.0
      %1934 = vmatprep.subr.mxu0 0.0
      %1935 = vmatpush2.msra.mxu0 0.0
      %1936 = vmatprep.subr.mxu0 0.0
      %1937 = vmatpush2.msra.mxu0 0.0
      %1938 = vmatprep.subr.mxu0 0.0
      %1939 = vmatpush2.msra.mxu0 0.0
      %1940 = vmatprep.subr.mxu0 0.0
      %1941 = vmatpush2.msra.mxu0 0.0
      %1942 = vmatprep.subr.mxu0 0.0
      %1943 = vmatpush2.msra.mxu0 0.0
      %1944 = vmatprep.subr.mxu0 0.0
      %1945 = vmatpush2.msra.mxu0 0.0
      %1946 = vmatprep.subr.mxu0 0.0
      %1947 = vmatpush2.msra.mxu0 0.0
      %1948 = vmatprep.subr.mxu0 0.0
      %1949 = vmatpush2.msra.mxu0 0.0
      %1950 = vmatprep.subr.mxu0 0.0
      %1951 = vmatpush2.msra.mxu0 0.0
      %1952 = vmatprep.subr.mxu0 0.0
      %1953 = vmatpush2.msra.mxu0 0.0
      %1954 = vmatprep.subr.mxu0 0.0
      %1955 = vmatpush2.msra.mxu0 0.0
      %1956 = vmatprep.subr.mxu0 0.0
      %1957 = vmatpush2.msra.mxu0 0.0
      %1958 = vmatprep.subr.mxu0 0.0
      %1959 = vmatpush2.msra.mxu0 0.0
      %1960 = vmatprep.subr.mxu0 0.0
      %1961 = vmatpush2.msra.mxu0 0.0
      %1962 = vmatprep.subr.mxu0 0.0
      %1963 = vmatpush2.msra.mxu0 0.0
      %1964 = vmatprep.mubr.f32.mxu0 0.0
      %1965 = vmatmul.mubr.f32.gmra.mxu0 %v1801
      %v1966 = vpop.f32.mrf.mxu0
      %v1967 = vadd.f32 0.0, %v1966
      %v1968 = vpop.f32.mrf.mxu0
      %1969 = vmatprep.mubr.f32.mxu0 0.0
      %1970 = vmatmul.mubr.f32.gmra.mxu0 %v1804
      %v1971 = vpop.f32.mrf.mxu0
      %v1972 = vadd.f32 0.0, %v1971
      %v1973 = vpop.f32.mrf.mxu0
      %1974 = vmatprep.mubr.f32.mxu0 0.0
      %1975 = vmatmul.mubr.f32.gmra.mxu0 %v1807
      %v1976 = vpop.f32.mrf.mxu0
      %v1977 = vadd.f32 0.0, %v1976
      %v1978 = vpop.f32.mrf.mxu0
      %1979 = vmatprep.mubr.f32.mxu0 0.0
      %1980 = vmatmul.mubr.f32.gmra.mxu0 %v1810
      %v1981 = vpop.f32.mrf.mxu0
      %v1982 = vadd.f32 0.0, %v1981
      %v1983 = vpop.f32.mrf.mxu0
      %1984 = vmatprep.mubr.f32.mxu0 0.0
      %1985 = vmatmul.mubr.f32.gmra.mxu0 %v1813
      %v1986 = vpop.f32.mrf.mxu0
      %v1987 = vadd.f32 0.0, %v1986
      %v1988 = vpop.f32.mrf.mxu0
      %1989 = vmatprep.mubr.f32.mxu0 0.0
      %1990 = vmatmul.mubr.f32.gmra.mxu0 %v1816
      %v1991 = vpop.f32.mrf.mxu0
      %v1992 = vadd.f32 0.0, %v1991
      %v1993 = vpop.f32.mrf.mxu0
      %1994 = vmatprep.mubr.f32.mxu0 0.0
      %1995 = vmatmul.mubr.f32.gmra.mxu0 %v1819
      %v1996 = vpop.f32.mrf.mxu0
      %v1997 = vadd.f32 0.0, %v1996
      %v1998 = vpop.f32.mrf.mxu0
      %1999 = vmatprep.mubr.f32.mxu0 0.0
      %2000 = vmatmul.mubr.f32.gmra.mxu0 %v1822
      %v2001 = vpop.f32.mrf.mxu0
      %v2002 = vadd.f32 0.0, %v2001
      %v2003 = vpop.f32.mrf.mxu0
      %2004 = vmatprep.mubr.f32.mxu0 0.0
      %2005 = vmatmul.mubr.f32.gmra.mxu0 %v1825
      %v2006 = vpop.f32.mrf.mxu0
      %v2007 = vadd.f32 0.0, %v2006
      %v2008 = vpop.f32.mrf.mxu0
      %2009 = vmatprep.mubr.f32.mxu0 0.0
      %2010 = vmatmul.mubr.f32.gmra.mxu0 %v1828
      %v2011 = vpop.f32.mrf.mxu0
      %v2012 = vadd.f32 0.0, %v2011
      %v2013 = vpop.f32.mrf.mxu0
      %2014 = vmatprep.mubr.f32.mxu0 0.0
      %2015 = vmatmul.mubr.f32.gmra.mxu0 %v1831
      %v2016 = vpop.f32.mrf.mxu0
      %v2017 = vadd.f32 0.0, %v2016
      %v2018 = vpop.f32.mrf.mxu0
      %2019 = vmatprep.mubr.f32.mxu0 0.0
      %2020 = vmatmul.mubr.f32.gmra.mxu0 %v1834
      %v2021 = vpop.f32.mrf.mxu0
      %v2022 = vadd.f32 0.0, %v2021
      %v2023 = vpop.f32.mrf.mxu0
      %2024 = vmatprep.mubr.f32.mxu0 0.0
      %2025 = vmatmul.mubr.f32.gmra.mxu0 %v1837
      %v2026 = vpop.f32.mrf.mxu0
      %v2027 = vadd.f32 0.0, %v2026
      %v2028 = vpop.f32.mrf.mxu0
      %2029 = vmatprep.mubr.f32.mxu0 0.0
      %2030 = vmatmul.mubr.f32.gmra.mxu0 %v1840
      %v2031 = vpop.f32.mrf.mxu0
      %v2032 = vadd.f32 0.0, %v2031
      %v2033 = vpop.f32.mrf.mxu0
      %2034 = vmatprep.mubr.f32.mxu0 0.0
      %2035 = vmatmul.mubr.f32.gmra.mxu0 %v1843
      %v2036 = vpop.f32.mrf.mxu0
      %v2037 = vadd.f32 0.0, %v2036
      %v2038 = vpop.f32.mrf.mxu0
      %2039 = vmatprep.mubr.f32.mxu0 0.0
      %2040 = vmatmul.mubr.f32.gmra.mxu0 %v1846
      %v2041 = vpop.f32.mrf.mxu0
      %v2042 = vadd.f32 0.0, %v2041
      %v2043 = vpop.f32.mrf.mxu0
      %2044 = vmatprep.mubr.f32.mxu0 0.0
      %2045 = vmatmul.mubr.f32.gmra.mxu0 %v1849
      %v2046 = vpop.f32.mrf.mxu0
      %v2047 = vadd.f32 0.0, %v2046
      %v2048 = vpop.f32.mrf.mxu0
      %2049 = vmatprep.mubr.f32.mxu0 0.0
      %2050 = vmatmul.mubr.f32.gmra.mxu0 %v1852
      %v2051 = vpop.f32.mrf.mxu0
      %v2052 = vadd.f32 0.0, %v2051
      %v2053 = vpop.f32.mrf.mxu0
      %2054 = vmatprep.mubr.f32.mxu0 0.0
      %2055 = vmatmul.mubr.f32.gmra.mxu0 %v1855
      %v2056 = vpop.f32.mrf.mxu0
      %v2057 = vadd.f32 0.0, %v2056
      %v2058 = vpop.f32.mrf.mxu0
      %2059 = vmatprep.mubr.f32.mxu0 0.0
      %2060 = vmatmul.mubr.f32.gmra.mxu0 %v1858
      %v2061 = vpop.f32.mrf.mxu0
      %v2062 = vadd.f32 0.0, %v2061
      %v2063 = vpop.f32.mrf.mxu0
      %2064 = vmatprep.mubr.f32.mxu0 0.0
      %2065 = vmatmul.mubr.f32.gmra.mxu0 %v1861
      %v2066 = vpop.f32.mrf.mxu0
      %v2067 = vadd.f32 0.0, %v2066
      %v2068 = vpop.f32.mrf.mxu0
      %2069 = vmatprep.mubr.f32.mxu0 0.0
      %2070 = vmatmul.mubr.f32.gmra.mxu0 %v1864
      %v2071 = vpop.f32.mrf.mxu0
      %v2072 = vadd.f32 0.0, %v2071
      %v2073 = vpop.f32.mrf.mxu0
      %2074 = vmatprep.mubr.f32.mxu0 0.0
      %2075 = vmatmul.mubr.f32.gmra.mxu0 %v1867
      %v2076 = vpop.f32.mrf.mxu0
      %v2077 = vadd.f32 0.0, %v2076
      %v2078 = vpop.f32.mrf.mxu0
      %2079 = vmatprep.mubr.f32.mxu0 0.0
      %2080 = vmatmul.mubr.f32.gmra.mxu0 %v1870
      %v2081 = vpop.f32.mrf.mxu0
      %v2082 = vadd.f32 0.0, %v2081
      %v2083 = vpop.f32.mrf.mxu0
      %2084 = vmatprep.mubr.f32.mxu0 0.0
      %2085 = vmatmul.mubr.f32.gmra.mxu0 %v1873
      %v2086 = vpop.f32.mrf.mxu0
      %v2087 = vadd.f32 0.0, %v2086
      %v2088 = vpop.f32.mrf.mxu0
      %2089 = vmatprep.mubr.f32.mxu0 0.0
      %2090 = vmatmul.mubr.f32.gmra.mxu0 %v1876
      %v2091 = vpop.f32.mrf.mxu0
      %v2092 = vadd.f32 0.0, %v2091
      %v2093 = vpop.f32.mrf.mxu0
      %2094 = vmatprep.mubr.f32.mxu0 0.0
      %2095 = vmatmul.mubr.f32.gmra.mxu0 %v1879
      %v2096 = vpop.f32.mrf.mxu0
      %v2097 = vadd.f32 0.0, %v2096
      %v2098 = vpop.f32.mrf.mxu0
      %2099 = vmatprep.mubr.f32.mxu0 0.0
      %2100 = vmatmul.mubr.f32.gmra.mxu0 %v1882
      %v2101 = vpop.f32.mrf.mxu0
      %v2102 = vadd.f32 0.0, %v2101
      %v2103 = vpop.f32.mrf.mxu0
      %2104 = vmatprep.mubr.f32.mxu0 0.0
      %2105 = vmatmul.mubr.f32.gmra.mxu0 %v1885
      %v2106 = vpop.f32.mrf.mxu0
      %v2107 = vadd.f32 0.0, %v2106
      %v2108 = vpop.f32.mrf.mxu0
      %2109 = vmatprep.mubr.f32.mxu0 0.0
      %2110 = vmatmul.mubr.f32.gmra.mxu0 %v1888
      %v2111 = vpop.f32.mrf.mxu0
      %v2112 = vadd.f32 0.0, %v2111
      %v2113 = vpop.f32.mrf.mxu0
      %2114 = vmatprep.mubr.f32.mxu0 0.0
      %2115 = vmatmul.mubr.f32.gmra.mxu0 %v1891
      %v2116 = vpop.f32.mrf.mxu0
      %v2117 = vadd.f32 0.0, %v2116
      %v2118 = vpop.f32.mrf.mxu0
      %2119 = vmatprep.mubr.f32.mxu0 0.0
      %2120 = vmatmul.mubr.f32.gmra.mxu0 %v1894
      %v2121 = vpop.f32.mrf.mxu0
      %v2122 = vadd.f32 0.0, %v2121
      %v2123 = vpop.f32.mrf.mxu0
      %2124 = vdwg.mxu0
      %2125 = vst.msk [vmem:[%s208] sm:$0xff] %vm1563, %v1967
      %2126 = vst.msk [vmem:[%s208 + $0x8] sm:$0xff] %vm1563, %v1972
      %2127 = vst.msk [vmem:[%s208 + $0x10] sm:$0xff] %vm1563, %v1977
      %2128 = vst.msk [vmem:[%s208 + $0x18] sm:$0xff] %vm1563, %v1982
      %2129 = vst.msk [vmem:[%s208 + $0x20] sm:$0xff] %vm1563, %v1987
      %2130 = vst.msk [vmem:[%s208 + $0x28] sm:$0xff] %vm1563, %v1992
      %2131 = vst.msk [vmem:[%s208 + $0x30] sm:$0xff] %vm1563, %v1997
      %2132 = vst.msk [vmem:[%s208 + $0x38] sm:$0xff] %vm1563, %v2002
      %2133 = vst.msk [vmem:[%s208 + $0x40] sm:$0xff] %vm1563, %v2007
      %2134 = vst.msk [vmem:[%s208 + $0x48] sm:$0xff] %vm1563, %v2012
      %2135 = vst.msk [vmem:[%s208 + $0x50] sm:$0xff] %vm1563, %v2017
      %2136 = vst.msk [vmem:[%s208 + $0x58] sm:$0xff] %vm1563, %v2022
      %2137 = vst.msk [vmem:[%s208 + $0x60] sm:$0xff] %vm1563, %v2027
      %2138 = vst.msk [vmem:[%s208 + $0x68] sm:$0xff] %vm1563, %v2032
      %2139 = vst.msk [vmem:[%s208 + $0x70] sm:$0xff] %vm1563, %v2037
      %2140 = vst.msk [vmem:[%s208 + $0x78] sm:$0xff] %vm1563, %v2042
      %2141 = vst.msk [vmem:[%s208 + $0x80] sm:$0xff] %vm1563, %v2047
      %2142 = vst.msk [vmem:[%s208 + $0x88] sm:$0xff] %vm1563, %v2052
      %2143 = vst.msk [vmem:[%s208 + $0x90] sm:$0xff] %vm1563, %v2057
      %2144 = vst.msk [vmem:[%s208 + $0x98] sm:$0xff] %vm1563, %v2062
      %2145 = vst.msk [vmem:[%s208 + $0xa0] sm:$0xff] %vm1563, %v2067
      %2146 = vst.msk [vmem:[%s208 + $0xa8] sm:$0xff] %vm1563, %v2072
      %2147 = vst.msk [vmem:[%s208 + $0xb0] sm:$0xff] %vm1563, %v2077
      %2148 = vst.msk [vmem:[%s208 + $0xb8] sm:$0xff] %vm1563, %v2082
      %2149 = vst.msk [vmem:[%s208 + $0xc0] sm:$0xff] %vm1563, %v2087
      %2150 = vst.msk [vmem:[%s208 + $0xc8] sm:$0xff] %vm1563, %v2092
      %2151 = vst.msk [vmem:[%s208 + $0xd0] sm:$0xff] %vm1563, %v2097
      %2152 = vst.msk [vmem:[%s208 + $0xd8] sm:$0xff] %vm1563, %v2102
      %2153 = vst.msk [vmem:[%s208 + $0xe0] sm:$0xff] %vm1563, %v2107
      %2154 = vst.msk [vmem:[%s208 + $0xe8] sm:$0xff] %vm1563, %v2112
      %2155 = vst.msk [vmem:[%s208 + $0xf0] sm:$0xff] %vm1563, %v2117
      %2156 = vst.msk [vmem:[%s208 + $0xf8] sm:$0xff] %vm1563, %v2122
      %v2157 = vsel %vm1563, %v1967, 0.0
      %v2158 = vsel %vm1563, %v1972, 0.0
      %v2159 = vadd.f32 %v2157, %v2158
      %v2160 = vsel %vm1563, %v1977, 0.0
      %v2161 = vadd.f32 %v2159, %v2160
      %v2162 = vsel %vm1563, %v1982, 0.0
      %v2163 = vadd.f32 %v2161, %v2162
      %v2164 = vsel %vm1563, %v1987, 0.0
      %v2165 = vadd.f32 %v2163, %v2164
      %v2166 = vsel %vm1563, %v1992, 0.0
      %v2167 = vadd.f32 %v2165, %v2166
      %v2168 = vsel %vm1563, %v1997, 0.0
      %v2169 = vadd.f32 %v2167, %v2168
      %v2170 = vsel %vm1563, %v2002, 0.0
      %v2171 = vadd.f32 %v2169, %v2170
      %v2172 = vsel %vm1563, %v2007, 0.0
      %v2173 = vadd.f32 %v2171, %v2172
      %v2174 = vsel %vm1563, %v2012, 0.0
      %v2175 = vadd.f32 %v2173, %v2174
      %v2176 = vsel %vm1563, %v2017, 0.0
      %v2177 = vadd.f32 %v2175, %v2176
      %v2178 = vsel %vm1563, %v2022, 0.0
      %v2179 = vadd.f32 %v2177, %v2178
      %v2180 = vsel %vm1563, %v2027, 0.0
      %v2181 = vadd.f32 %v2179, %v2180
      %v2182 = vsel %vm1563, %v2032, 0.0
      %v2183 = vadd.f32 %v2181, %v2182
      %v2184 = vsel %vm1563, %v2037, 0.0
      %v2185 = vadd.f32 %v2183, %v2184
      %v2186 = vsel %vm1563, %v2042, 0.0
      %v2187 = vadd.f32 %v2185, %v2186
      %v2188 = vsel %vm1563, %v2047, 0.0
      %v2189 = vadd.f32 %v2187, %v2188
      %v2190 = vsel %vm1563, %v2052, 0.0
      %v2191 = vadd.f32 %v2189, %v2190
      %v2192 = vsel %vm1563, %v2057, 0.0
      %v2193 = vadd.f32 %v2191, %v2192
      %v2194 = vsel %vm1563, %v2062, 0.0
      %v2195 = vadd.f32 %v2193, %v2194
      %v2196 = vsel %vm1563, %v2067, 0.0
      %v2197 = vadd.f32 %v2195, %v2196
      %v2198 = vsel %vm1563, %v2072, 0.0
      %v2199 = vadd.f32 %v2197, %v2198
      %v2200 = vsel %vm1563, %v2077, 0.0
      %v2201 = vadd.f32 %v2199, %v2200
      %v2202 = vsel %vm1563, %v2082, 0.0
      %v2203 = vadd.f32 %v2201, %v2202
      %v2204 = vsel %vm1563, %v2087, 0.0
      %v2205 = vadd.f32 %v2203, %v2204
      %v2206 = vsel %vm1563, %v2092, 0.0
      %v2207 = vadd.f32 %v2205, %v2206
      %v2208 = vsel %vm1563, %v2097, 0.0
      %v2209 = vadd.f32 %v2207, %v2208
      %v2210 = vsel %vm1563, %v2102, 0.0
      %v2211 = vadd.f32 %v2209, %v2210
      %v2212 = vsel %vm1563, %v2107, 0.0
      %v2213 = vadd.f32 %v2211, %v2212
      %v2214 = vsel %vm1563, %v2112, 0.0
      %v2215 = vadd.f32 %v2213, %v2214
      %v2216 = vsel %vm1563, %v2117, 0.0
      %v2217 = vadd.f32 %v2215, %v2216
      %v2218 = vsel %vm1563, %v2122, 0.0
      %v2219 = vadd.f32 %v2217, %v2218
      %v2220 = vrot.slane %v2219, 4
      %v2221 = vadd.f32 %v2219, %v2220
      %v2222 = vrot.slane %v2221, 2
      %v2223 = vadd.f32 %v2221, %v2222
      %v2224 = vrot.slane %v2223, 1
      %v2225 = vadd.f32 %v2223, %v2224
      %vm2226 = vcmask 57344
      %2227 = vst.msk [vmem:[%s212] sm:$0x1] %vm2226, %v2225
      %v2228 = vmul.f32 %v1967, %v1967
      %v2229 = vmul.f32 %v1972, %v1972
      %v2230 = vmul.f32 %v1977, %v1977
      %v2231 = vmul.f32 %v1982, %v1982
      %v2232 = vmul.f32 %v1987, %v1987
      %v2233 = vmul.f32 %v1992, %v1992
      %v2234 = vmul.f32 %v1997, %v1997
      %v2235 = vmul.f32 %v2002, %v2002
      %v2236 = vmul.f32 %v2007, %v2007
      %v2237 = vmul.f32 %v2012, %v2012
      %v2238 = vmul.f32 %v2017, %v2017
      %v2239 = vmul.f32 %v2022, %v2022
      %v2240 = vmul.f32 %v2027, %v2027
      %v2241 = vmul.f32 %v2032, %v2032
      %v2242 = vmul.f32 %v2037, %v2037
      %v2243 = vmul.f32 %v2042, %v2042
      %v2244 = vmul.f32 %v2047, %v2047
      %v2245 = vmul.f32 %v2052, %v2052
      %v2246 = vmul.f32 %v2057, %v2057
      %v2247 = vmul.f32 %v2062, %v2062
      %v2248 = vmul.f32 %v2067, %v2067
      %v2249 = vmul.f32 %v2072, %v2072
      %v2250 = vmul.f32 %v2077, %v2077
      %v2251 = vmul.f32 %v2082, %v2082
      %v2252 = vmul.f32 %v2087, %v2087
      %v2253 = vmul.f32 %v2092, %v2092
      %v2254 = vmul.f32 %v2097, %v2097
      %v2255 = vmul.f32 %v2102, %v2102
      %v2256 = vmul.f32 %v2107, %v2107
      %v2257 = vmul.f32 %v2112, %v2112
      %v2258 = vmul.f32 %v2117, %v2117
      %v2259 = vmul.f32 %v2122, %v2122
      %v2260 = vsel %vm1563, %v2228, 0.0
      %v2261 = vsel %vm1563, %v2229, 0.0
      %v2262 = vadd.f32 %v2260, %v2261
      %v2263 = vsel %vm1563, %v2230, 0.0
      %v2264 = vadd.f32 %v2262, %v2263
      %v2265 = vsel %vm1563, %v2231, 0.0
      %v2266 = vadd.f32 %v2264, %v2265
      %v2267 = vsel %vm1563, %v2232, 0.0
      %v2268 = vadd.f32 %v2266, %v2267
      %v2269 = vsel %vm1563, %v2233, 0.0
      %v2270 = vadd.f32 %v2268, %v2269
      %v2271 = vsel %vm1563, %v2234, 0.0
      %v2272 = vadd.f32 %v2270, %v2271
      %v2273 = vsel %vm1563, %v2235, 0.0
      %v2274 = vadd.f32 %v2272, %v2273
      %v2275 = vsel %vm1563, %v2236, 0.0
      %v2276 = vadd.f32 %v2274, %v2275
      %v2277 = vsel %vm1563, %v2237, 0.0
      %v2278 = vadd.f32 %v2276, %v2277
      %v2279 = vsel %vm1563, %v2238, 0.0
      %v2280 = vadd.f32 %v2278, %v2279
      %v2281 = vsel %vm1563, %v2239, 0.0
      %v2282 = vadd.f32 %v2280, %v2281
      %v2283 = vsel %vm1563, %v2240, 0.0
      %v2284 = vadd.f32 %v2282, %v2283
      %v2285 = vsel %vm1563, %v2241, 0.0
      %v2286 = vadd.f32 %v2284, %v2285
      %v2287 = vsel %vm1563, %v2242, 0.0
      %v2288 = vadd.f32 %v2286, %v2287
      %v2289 = vsel %vm1563, %v2243, 0.0
      %v2290 = vadd.f32 %v2288, %v2289
      %v2291 = vsel %vm1563, %v2244, 0.0
      %v2292 = vadd.f32 %v2290, %v2291
      %v2293 = vsel %vm1563, %v2245, 0.0
      %v2294 = vadd.f32 %v2292, %v2293
      %v2295 = vsel %vm1563, %v2246, 0.0
      %v2296 = vadd.f32 %v2294, %v2295
      %v2297 = vsel %vm1563, %v2247, 0.0
      %v2298 = vadd.f32 %v2296, %v2297
      %v2299 = vsel %vm1563, %v2248, 0.0
      %v2300 = vadd.f32 %v2298, %v2299
      %v2301 = vsel %vm1563, %v2249, 0.0
      %v2302 = vadd.f32 %v2300, %v2301
      %v2303 = vsel %vm1563, %v2250, 0.0
      %v2304 = vadd.f32 %v2302, %v2303
      %v2305 = vsel %vm1563, %v2251, 0.0
      %v2306 = vadd.f32 %v2304, %v2305
      %v2307 = vsel %vm1563, %v2252, 0.0
      %v2308 = vadd.f32 %v2306, %v2307
      %v2309 = vsel %vm1563, %v2253, 0.0
      %v2310 = vadd.f32 %v2308, %v2309
      %v2311 = vsel %vm1563, %v2254, 0.0
      %v2312 = vadd.f32 %v2310, %v2311
      %v2313 = vsel %vm1563, %v2255, 0.0
      %v2314 = vadd.f32 %v2312, %v2313
      %v2315 = vsel %vm1563, %v2256, 0.0
      %v2316 = vadd.f32 %v2314, %v2315
      %v2317 = vsel %vm1563, %v2257, 0.0
      %v2318 = vadd.f32 %v2316, %v2317
      %v2319 = vsel %vm1563, %v2258, 0.0
      %v2320 = vadd.f32 %v2318, %v2319
      %v2321 = vsel %vm1563, %v2259, 0.0
      %v2322 = vadd.f32 %v2320, %v2321
      %v2323 = vrot.slane %v2322, 4
      %v2324 = vadd.f32 %v2322, %v2323
      %v2325 = vrot.slane %v2324, 2
      %v2326 = vadd.f32 %v2324, %v2325
      %v2327 = vrot.slane %v2326, 1
      %v2328 = vadd.f32 %v2326, %v2327
      %2329 = vst.msk [vmem:[%s215] sm:$0x1] %vm2226, %v2328
      %s2330 = smul.u32 32, %s16
      %p2331 = scmp.lt.s32.totalorder %s2330, 63
      %s2332 = scalar_select %p2331, %s2330, 63
      %s2333 = smul.addr %s2332, 8
      %s2334 = scalar_lea.vmem %s2, %s2333
      %p2335 = scmp.lt.s32.totalorder %s16, 1
      %s2336 = scalar_select %p2335, %s16, 1
      %s2337 = scalar_lea.vmem %s3, %s2336
      %p2338 = scmp.lt.s32.totalorder %s16, 1
      %s2339 = scalar_select %p2338, %s16, 1
      %s2340 = scalar_lea.vmem %s4, %s2339
      // Predicated region
      $region29: #{conv_block_forward.2} parent=27 // pred_check
        %p2341 = pneg %p81
      $region30: #{conv_block_forward.2} parent=27 // pred_check_branch
        %2343 = sbr.rel (%p2341) target = $region32
      $region31: #{conv_block_forward.2} parent=27 // pred_region
        %s2344 = smul.u32 32, %s16
      $region32: #{conv_block_forward.2} parent=27 // pred_fallthru
        _
      // Predicated region
      $region33: #{conv_block_forward.2} parent=27 // pred_check
        %p2345 = pneg %p107
      $region34: #{conv_block_forward.2} parent=27 // pred_check_branch
        %2347 = sbr.rel (%p2345) target = $region36
      $region35: #{conv_block_forward.2} parent=27 // pred_region
        _
      $region36: #{conv_block_forward.2} parent=27 // pred_fallthru
        _
      // Predicated region
      $region37: #{conv_block_forward.2} parent=27 // pred_check
        %p2348 = pneg %p133
      $region38: #{conv_block_forward.2} parent=27 // pred_check_branch
        %2350 = sbr.rel (%p2348) target = $region40
      $region39: #{conv_block_forward.2} parent=27 // pred_region
        _
      $region40: #{conv_block_forward.2} parent=27 // pred_fallthru
        _
    $region28: #{conv_block_forward.2} parent=5 // pred_fallthru
      _
    %p2351 = scmp.le.s32.totalorder 2, %s11
    // Predicated region
    $region41: #{conv_block_forward.2} parent=5 // pred_check
      %p2352 = pneg %p2351
    $region42: #{conv_block_forward.2} parent=5 // pred_check_branch
      %2354 = sbr.rel (%p2352) target = $region44
    $region43: #{conv_block_forward.2} parent=5 // pred_region
      %s2355 = ssub.s32 %s11, 2
      // Predicated region
      $region45: #{conv_block_forward.2} parent=43 // pred_check
        %p2356 = pneg %p87
      $region46: #{conv_block_forward.2} parent=43 // pred_check_branch
        %2358 = sbr.rel (%p2356) target = $region48
      $region47: #{conv_block_forward.2} parent=43 // pred_region
        %s2359 = smul.u32 32, %s17
        %p2360 = scmp.lt.s32.totalorder %s2359, 63
        %s2361 = scalar_select %p2360, %s2359, 63
        %s2362 = smul.addr %s2361, 8
        %s2363 = scalar_lea.vmem %s2, %s2362
      $region48: #{conv_block_forward.2} parent=43 // pred_fallthru
        _
      // Predicated region
      $region49: #{conv_block_forward.2} parent=43 // pred_check
        %p2364 = pneg %p113
      $region50: #{conv_block_forward.2} parent=43 // pred_check_branch
        %2366 = sbr.rel (%p2364) target = $region52
      $region51: #{conv_block_forward.2} parent=43 // pred_region
        %p2367 = scmp.lt.s32.totalorder %s17, 1
        %s2368 = scalar_select %p2367, %s17, 1
        %s2369 = scalar_lea.vmem %s3, %s2368
      $region52: #{conv_block_forward.2} parent=43 // pred_fallthru
        _
      // Predicated region
      $region53: #{conv_block_forward.2} parent=43 // pred_check
        %p2370 = pneg %p139
      $region54: #{conv_block_forward.2} parent=43 // pred_check_branch
        %2372 = sbr.rel (%p2370) target = $region56
      $region55: #{conv_block_forward.2} parent=43 // pred_region
        %p2373 = scmp.lt.s32.totalorder %s17, 1
        %s2374 = scalar_select %p2373, %s17, 1
        %s2375 = scalar_lea.vmem %s4, %s2374
      $region56: #{conv_block_forward.2} parent=43 // pred_fallthru
        _
    $region44: #{conv_block_forward.2} parent=5 // pred_fallthru
      _
  $region6: #{conv_block_forward.2} parent=0 // loop_footer
    %s15 = sadd.s32 1, %s11
  $region7: #{conv_block_forward.2} parent=0 // loop_footer_branch
    %10 = sbr.rel target = $region3
  $region8: #{conv_block_forward.2} parent=0 // loop_exit
    _

</llo_original>
